<compile_context>
chip_gen: v7x
topology: tpu7x:2x2x1
jax: 0.10.0
libtpu: 0.0.40
codegen_flags: <defaults>
</compile_context>

<pallas_src>
import math

import jax
import jax.numpy as jnp
from jax.experimental import pallas as pl
from jax.experimental.pallas import tpu as pltpu

# ---------------------------------------------------------------------------
# Gen_50 hyper-parameters (hard-coded in the PyTorch __init__)
# ---------------------------------------------------------------------------
N_HOSTS = 50
N_HIDDEN = 64
PROTO_DIM = 2                       # global constant in the repo
N_E = N_HOSTS * PROTO_DIM           # 100   (flattened e)
N_OUT = N_HOSTS * N_HOSTS           # 2500  (flattened s / output)
N_IN = N_E + N_OUT                  # 2600  (Linear input width)


# ---------------------------------------------------------------------------
# Fused kernel: delta MLP + residual update, all in one VMEM-resident call
# ---------------------------------------------------------------------------
def _gen50_kernel(e_ref, s_ref, w1e_ref, w1s_ref, b1_ref, w2t_ref, b2_ref, out_ref):
    f32 = jnp.float32
    bf16 = jnp.bfloat16

    # delta[0]: Linear(2600, 64), with the torch.cat folded into two
    # contractions:  h = [e | s] @ W1^T + b1  ==  e @ W1e + s @ W1s + b1.
    # Weights arrive in bf16; activations are cast at the dot call sites so the
    # MXU runs native bf16 with f32 accumulation.
    s_f32 = s_ref[...]
    h = (jnp.dot(e_ref[...].astype(bf16), w1e_ref[...], preferred_element_type=f32)
         + jnp.dot(s_f32.astype(bf16), w1s_ref[...], preferred_element_type=f32)
         + b1_ref[...])

    # delta[1]: nn.LeakyReLU(True) -> positional arg is negative_slope,
    # True == 1.0 -> identity (no op emitted).
    # TODO(synk): if the author actually meant inplace=True (default slope
    #             0.01), replace with: h = jnp.where(h > 0, h, 0.01 * h)

    # delta[2..3]: Linear(64, 2500) + Tanh — one (1,64)@(64,2500) MXU matmul,
    # tanh goes to the EUP.
    d = jnp.tanh(jnp.dot(h.astype(bf16), w2t_ref[...], preferred_element_type=f32)
                 + b2_ref[...])

    # forward: s + 4 * del_s, kept flat / lane-dense (2500-wide stores); the
    # (50, 50) reshape happens in the wrapper (layout plumbing, not compute).
    out_ref[...] = s_f32 + 4.0 * d


def _vmem_specs(n):
    return [pl.BlockSpec(memory_space=pltpu.MemorySpace.VMEM) for _ in range(n)]


_COST = pl.CostEstimate(
    flops=2 * (N_IN * N_HIDDEN + N_HIDDEN * N_OUT),
    transcendentals=N_OUT,
    bytes_accessed=(2 * (N_IN * N_HIDDEN + N_HIDDEN * N_OUT)   # bf16 weights
                    + 4 * (N_HIDDEN + N_OUT)                   # f32 biases
                    + 4 * N_IN                                 # f32 e, s
                    + 4 * N_OUT),                              # f32 output
)


# ---------------------------------------------------------------------------
# One-time parameter preparation (OUTSIDE the jitted hot path)
# ---------------------------------------------------------------------------
def prepare_params(params):
    """Transpose / split / cast the PyTorch-layout params exactly once."""
    bf16 = jnp.bfloat16
    f32 = jnp.float32
    w1t = params['w1'].T                                  # (2600, 64) = W1^T
    return {
        'w1e': jnp.asarray(w1t[:N_E, :], bf16),           # (100, 64)
        'w1s': jnp.asarray(w1t[N_E:, :], bf16),           # (2500, 64)
        'b1':  jnp.asarray(params['b1'][None, :], f32),   # (1, 64)
        'w2t': jnp.asarray(params['w2'].T, bf16),         # (64, 2500) = W2^T
        'b2':  jnp.asarray(params['b2'][None, :], f32),   # (1, 2500)
    }


# ---------------------------------------------------------------------------
# Wrapper
# ---------------------------------------------------------------------------
def gen50_forward(prep, e, s):
    """Pallas forward of Gen_50.

    prep : dict from prepare_params()
    e    : (50, PROTO_DIM) per-host prototype embeddings
    s    : (50, 50)        scheduling matrix
    returns (50, 50):  s + 4 * delta(cat(e.view(-1), s.view(-1))).reshape(50, 50)
    """
    f32 = jnp.float32
    e_flat = e.reshape(1, N_E).astype(f32)                # cat(e.view(-1), ...)
    s_flat = s.reshape(1, N_OUT).astype(f32)              # ... s.view(-1))
    inputs = (e_flat, s_flat,
              prep['w1e'], prep['w1s'], prep['b1'],
              prep['w2t'], prep['b2'])
    out_flat = pl.pallas_call(
        _gen50_kernel,
        out_shape=jax.ShapeDtypeStruct((1, N_OUT), f32),
        in_specs=_vmem_specs(len(inputs)),
        out_specs=pl.BlockSpec(memory_space=pltpu.MemorySpace.VMEM),
        cost_estimate=_COST,
    )(*inputs)
    return out_flat.reshape(N_HOSTS, N_HOSTS)


# ---------------------------------------------------------------------------
# Deterministic parameter init (shapes from Gen_50.__init__, PyTorch defaults)
# ---------------------------------------------------------------------------
def init_params(key):
    ks = jax.random.split(key, 4)

    def u(k, shape, fan_in):
        b = 1.0 / math.sqrt(fan_in)
        return jax.random.uniform(k, shape, jnp.float32, -b, b)

    return {
        'w1': u(ks[0], (N_HIDDEN, N_IN), N_IN),       # Linear(2600, 64).weight
        'b1': u(ks[1], (N_HIDDEN,), N_IN),            # Linear(2600, 64).bias
        'w2': u(ks[2], (N_OUT, N_HIDDEN), N_HIDDEN),  # Linear(64, 2500).weight
        'b2': u(ks[3], (N_OUT,), N_HIDDEN),           # Linear(64, 2500).bias
    }


# Pure-JAX f32 reference (for a cheap in-script correctness check)
def _reference(params, e, s):
    x = jnp.concatenate([e.reshape(-1), s.reshape(-1)])
    h = jnp.dot(x, params['w1'].T, precision=jax.lax.Precision.HIGHEST) + params['b1']
    # LeakyReLU(negative_slope=1.0) == identity
    d = jnp.tanh(jnp.dot(h, params['w2'].T,
                         precision=jax.lax.Precision.HIGHEST) + params['b2'])
    return s + 4.0 * d.reshape(N_HOSTS, N_HOSTS)


if __name__ == "__main__":
    key = jax.random.PRNGKey(0)
    kp, ke, ks = jax.random.split(key, 3)
    params = init_params(kp)
    prep = prepare_params(params)          # one-time, outside the hot path

    e = jax.random.normal(ke, (N_HOSTS, PROTO_DIM), jnp.float32)   # (50, 2)
    s = jax.random.normal(ks, (N_HOSTS, N_HOSTS), jnp.float32)     # (50, 50)

    fwd = jax.jit(gen50_forward)
    out = fwd(prep, e, s)
    jax.block_until_ready(out)

    assert out.shape == (N_HOSTS, N_HOSTS)
    assert bool(jnp.all(jnp.isfinite(out)))
    # residual update is bounded: |out - s| <= 4 (tanh range)
    assert bool(jnp.all(jnp.abs(out - s) <= 4.0 + 1e-4))
    ref = _reference(params, e, s)
    # bf16 weights + f32 accumulation: error stays well inside this tolerance
    assert bool(jnp.allclose(out, ref, atol=3e-2, rtol=2e-2))
    print("KERNEL_OK")
</pallas_src>

<mosaic_0001>
module attributes {stable_mosaic.version = 11 : i64} {
  func.func @_gen50_kernel(%arg0: memref<1x100xf32, #tpu.memory_space<vmem>>, %arg1: memref<1x2500xf32, #tpu.memory_space<vmem>>, %arg2: memref<100x64xbf16, #tpu.memory_space<vmem>>, %arg3: memref<2500x64xbf16, #tpu.memory_space<vmem>>, %arg4: memref<1x64xf32, #tpu.memory_space<vmem>>, %arg5: memref<64x2500xbf16, #tpu.memory_space<vmem>>, %arg6: memref<1x2500xf32, #tpu.memory_space<vmem>>, %arg7: memref<1x2500xf32, #tpu.memory_space<vmem>>) attributes {dimension_semantics = [], scalar_prefetch = 0 : i64, scratch_operands = 0 : i64, tpu.core_type = #tpu.core_type<tc>} {
    %c0 = arith.constant 0 : index
    %c0_0 = arith.constant 0 : index
    %0 = vector.load %arg1[%c0, %c0_0] : memref<1x2500xf32, #tpu.memory_space<vmem>>, vector<1x2500xf32>
    %c0_1 = arith.constant 0 : index
    %c0_2 = arith.constant 0 : index
    %1 = vector.load %arg0[%c0_1, %c0_2] : memref<1x100xf32, #tpu.memory_space<vmem>>, vector<1x100xf32>
    %2 = arith.truncf %1 : vector<1x100xf32> to vector<1x100xbf16>
    %c0_3 = arith.constant 0 : index
    %c0_4 = arith.constant 0 : index
    %3 = vector.load %arg2[%c0_3, %c0_4] : memref<100x64xbf16, #tpu.memory_space<vmem>>, vector<100x64xbf16>
    %cst = arith.constant dense<0.000000e+00> : vector<1x64xf32>
    %4 = tpu.matmul %2, %3, %cst {dimension_numbers = #tpu.dot_dimension_numbers<[1], [0], [0], [1], [0, 0, 1, 1], [], []>} : vector<1x100xbf16>, vector<100x64xbf16>, vector<1x64xf32> -> vector<1x64xf32>
    %5 = arith.truncf %0 : vector<1x2500xf32> to vector<1x2500xbf16>
    %c0_5 = arith.constant 0 : index
    %c0_6 = arith.constant 0 : index
    %6 = vector.load %arg3[%c0_5, %c0_6] : memref<2500x64xbf16, #tpu.memory_space<vmem>>, vector<2500x64xbf16>
    %cst_7 = arith.constant dense<0.000000e+00> : vector<1x64xf32>
    %7 = tpu.matmul %5, %6, %cst_7 {dimension_numbers = #tpu.dot_dimension_numbers<[1], [0], [0], [1], [0, 0, 1, 1], [], []>} : vector<1x2500xbf16>, vector<2500x64xbf16>, vector<1x64xf32> -> vector<1x64xf32>
    %8 = arith.addf %4, %7 : vector<1x64xf32>
    %c0_8 = arith.constant 0 : index
    %c0_9 = arith.constant 0 : index
    %9 = vector.load %arg4[%c0_8, %c0_9] : memref<1x64xf32, #tpu.memory_space<vmem>>, vector<1x64xf32>
    %10 = arith.addf %8, %9 : vector<1x64xf32>
    %11 = arith.truncf %10 : vector<1x64xf32> to vector<1x64xbf16>
    %c0_10 = arith.constant 0 : index
    %c0_11 = arith.constant 0 : index
    %12 = vector.load %arg5[%c0_10, %c0_11] : memref<64x2500xbf16, #tpu.memory_space<vmem>>, vector<64x2500xbf16>
    %cst_12 = arith.constant dense<0.000000e+00> : vector<1x2500xf32>
    %13 = tpu.matmul %11, %12, %cst_12 {dimension_numbers = #tpu.dot_dimension_numbers<[1], [0], [0], [1], [0, 0, 1, 1], [], []>} : vector<1x64xbf16>, vector<64x2500xbf16>, vector<1x2500xf32> -> vector<1x2500xf32>
    %c0_13 = arith.constant 0 : index
    %c0_14 = arith.constant 0 : index
    %14 = vector.load %arg6[%c0_13, %c0_14] : memref<1x2500xf32, #tpu.memory_space<vmem>>, vector<1x2500xf32>
    %15 = arith.addf %13, %14 : vector<1x2500xf32>
    %16 = math.tanh %15 : vector<1x2500xf32>
    %cst_15 = arith.constant 4.000000e+00 : f32
    %17 = vector.broadcast %cst_15 : f32 to vector<1x2500xf32>
    %18 = arith.mulf %17, %16 : vector<1x2500xf32>
    %19 = arith.addf %0, %18 : vector<1x2500xf32>
    %c0_16 = arith.constant 0 : index
    %c0_17 = arith.constant 0 : index
    %20 = vector.load %arg7[%c0_16, %c0_17] : memref<1x2500xf32, #tpu.memory_space<vmem>>, vector<1x2500xf32>
    tpu.vector_store %arg7[%c0_16, %c0_17], %19 {strides = array<i32>} : memref<1x2500xf32, #tpu.memory_space<vmem>>, vector<1x2500xf32>,
    return
  }
}

</mosaic_0001>

<llo_original>
// kernel: gen50_forward.1
$region0: #{gen50_forward.1}
  #allocation0 [shape = 'u32[]', space=smem, size = 0x4, offset = 0x4, fixed_abs, tag = 'smem constant byte address 0x4 - core index']
  #allocation1 [shape = 'u32[144,128]{1,0:T(1,128)}', space=vmem, size = 0x12000, scoped, tag = 'internal scratch']
  %s0 = inlined_call_operand.vmem [shape: f32[1,100], index: 0, kind: input, shape index: {}]
  %s1 = inlined_call_operand.vmem [shape: f32[1,2500], index: 1, kind: input, shape index: {}]
  %s2 = inlined_call_operand.vmem [shape: bf16[100,64], index: 2, kind: input, shape index: {}]
  %s3 = inlined_call_operand.vmem [shape: bf16[2500,64], index: 3, kind: input, shape index: {}]
  %s4 = inlined_call_operand.vmem [shape: f32[1,64], index: 4, kind: input, shape index: {}]
  %s5 = inlined_call_operand.vmem [shape: bf16[64,2500], index: 5, kind: input, shape index: {}]
  %s6 = inlined_call_operand.vmem [shape: f32[1,2500], index: 6, kind: input, shape index: {}]
  %s7 = inlined_call_operand.vmem [shape: f32[1,2500], index: 7, kind: output, shape index: {}]
  %s8 = sld [smem:[#allocation0]]
  $region38: #{gen50_forward.1} parent=0
    _
  %s10 = ssub.s32 1, %s8
  %s11 = scalar_select 0, %s10, %s8
  // Predicated region
  $region2: #{gen50_forward.1} parent=0 // pred_check
    _
  $region3: #{gen50_forward.1} parent=0 // pred_check_branch
    %13 = sbr.rel (0) target = $region5
  $region4: #{gen50_forward.1} parent=0 // pred_region
    _
  $region5: #{gen50_forward.1} parent=0 // pred_fallthru
    _
  // Predicated region
  $region6: #{gen50_forward.1} parent=0 // pred_check
    _
  $region7: #{gen50_forward.1} parent=0 // pred_check_branch
    %15 = sbr.rel (0) target = $region9
  $region8: #{gen50_forward.1} parent=0 // pred_region
    _
  $region9: #{gen50_forward.1} parent=0 // pred_fallthru
    _
  // Predicated region
  $region10: #{gen50_forward.1} parent=0 // pred_check
    _
  $region11: #{gen50_forward.1} parent=0 // pred_check_branch
    %17 = sbr.rel (0) target = $region13
  $region12: #{gen50_forward.1} parent=0 // pred_region
    _
  $region13: #{gen50_forward.1} parent=0 // pred_fallthru
    _
  // Predicated region
  $region14: #{gen50_forward.1} parent=0 // pred_check
    _
  $region15: #{gen50_forward.1} parent=0 // pred_check_branch
    %19 = sbr.rel (0) target = $region17
  $region16: #{gen50_forward.1} parent=0 // pred_region
    _
  $region17: #{gen50_forward.1} parent=0 // pred_fallthru
    _
  // Predicated region
  $region18: #{gen50_forward.1} parent=0 // pred_check
    _
  $region19: #{gen50_forward.1} parent=0 // pred_check_branch
    %21 = sbr.rel (0) target = $region21
  $region20: #{gen50_forward.1} parent=0 // pred_region
    _
  $region21: #{gen50_forward.1} parent=0 // pred_fallthru
    _
  // Predicated region
  $region22: #{gen50_forward.1} parent=0 // pred_check
    _
  $region23: #{gen50_forward.1} parent=0 // pred_check_branch
    %23 = sbr.rel (0) target = $region25
  $region24: #{gen50_forward.1} parent=0 // pred_region
    _
  $region25: #{gen50_forward.1} parent=0 // pred_fallthru
    _
  // Predicated region
  $region26: #{gen50_forward.1} parent=0 // pred_check
    _
  $region27: #{gen50_forward.1} parent=0 // pred_check_branch
    %25 = sbr.rel (0) target = $region29
  $region28: #{gen50_forward.1} parent=0 // pred_region
    _
  $region29: #{gen50_forward.1} parent=0 // pred_fallthru
    _
  %v27 = vld [vmem:[%s1] sm:$0xff]
  %v28 = vld [vmem:[%s1 + $0x8] sm:$0xff]
  %v29 = vld [vmem:[%s1 + $0x10] sm:$0xf]
  %v30 = vld [vmem:[%s0] sm:$0x1]
  %v31 = vpack.c.bf16 %v30, %v30
  %v32 = vld [vmem:[%s2] sm:$0xf]
  %v33 = vld [vmem:[%s2 + $0x4] sm:$0xf]
  %v34 = vld [vmem:[%s2 + $0x8] sm:$0xf]
  %v35 = vld [vmem:[%s2 + $0xc] sm:$0xf]
  %v36 = vld [vmem:[%s2 + $0x10] sm:$0xf]
  %v37 = vld [vmem:[%s2 + $0x14] sm:$0xf]
  %v38 = vld [vmem:[%s2 + $0x18] sm:$0xf]
  %v39 = vld [vmem:[%s2 + $0x1c] sm:$0xf]
  %v40 = vld [vmem:[%s2 + $0x20] sm:$0xf]
  %v41 = vld [vmem:[%s2 + $0x24] sm:$0xf]
  %v42 = vld [vmem:[%s2 + $0x28] sm:$0xf]
  %v43 = vld [vmem:[%s2 + $0x2c] sm:$0xf]
  %v44 = vld [vmem:[%s2 + $0x30] sm:$0x3]
  %v48 = vlaneseq
  %v49 = vshrl.u32 %v48, 7
  %v50 = vsub.s32 0, %v49
  %v51 = vrot.slane %v27, %v50
  %v52 = vlaneseq
  %v53 = vshrl.u32 %v52, 7
  %v54 = vsub.s32 1, %v53
  %v55 = vrot.slane %v27, %v54
  %v56 = vlaneseq
  %v57 = vshrl.u32 %v56, 7
  %v58 = vsub.s32 2, %v57
  %v59 = vrot.slane %v27, %v58
  %v60 = vlaneseq
  %v61 = vshrl.u32 %v60, 7
  %v62 = vsub.s32 3, %v61
  %v63 = vrot.slane %v27, %v62
  %v64 = vlaneseq
  %v65 = vshrl.u32 %v64, 7
  %v66 = vsub.s32 4, %v65
  %v67 = vrot.slane %v27, %v66
  %v68 = vlaneseq
  %v69 = vshrl.u32 %v68, 7
  %v70 = vsub.s32 5, %v69
  %v71 = vrot.slane %v27, %v70
  %v72 = vlaneseq
  %v73 = vshrl.u32 %v72, 7
  %v74 = vsub.s32 6, %v73
  %v75 = vrot.slane %v27, %v74
  %v76 = vlaneseq
  %v77 = vshrl.u32 %v76, 7
  %v78 = vsub.s32 7, %v77
  %v79 = vrot.slane %v27, %v78
  %v80 = vlaneseq
  %v81 = vshrl.u32 %v80, 7
  %v82 = vsub.s32 0, %v81
  %v83 = vrot.slane %v28, %v82
  %v84 = vlaneseq
  %v85 = vshrl.u32 %v84, 7
  %v86 = vsub.s32 1, %v85
  %v87 = vrot.slane %v28, %v86
  %v88 = vlaneseq
  %v89 = vshrl.u32 %v88, 7
  %v90 = vsub.s32 2, %v89
  %v91 = vrot.slane %v28, %v90
  %v92 = vlaneseq
  %v93 = vshrl.u32 %v92, 7
  %v94 = vsub.s32 3, %v93
  %v95 = vrot.slane %v28, %v94
  %v96 = vlaneseq
  %v97 = vshrl.u32 %v96, 7
  %v98 = vsub.s32 4, %v97
  %v99 = vrot.slane %v28, %v98
  %v100 = vlaneseq
  %v101 = vshrl.u32 %v100, 7
  %v102 = vsub.s32 5, %v101
  %v103 = vrot.slane %v28, %v102
  %v104 = vlaneseq
  %v105 = vshrl.u32 %v104, 7
  %v106 = vsub.s32 6, %v105
  %v107 = vrot.slane %v28, %v106
  %v108 = vlaneseq
  %v109 = vshrl.u32 %v108, 7
  %v110 = vsub.s32 7, %v109
  %v111 = vrot.slane %v28, %v110
  %v112 = vlaneseq
  %v113 = vshrl.u32 %v112, 7
  %v114 = vsub.s32 0, %v113
  %v115 = vrot.slane %v29, %v114
  %v116 = vlaneseq
  %v117 = vshrl.u32 %v116, 7
  %v118 = vsub.s32 1, %v117
  %v119 = vrot.slane %v29, %v118
  %v120 = vlaneseq
  %v121 = vshrl.u32 %v120, 7
  %v122 = vsub.s32 2, %v121
  %v123 = vrot.slane %v29, %v122
  %v124 = vlaneseq
  %v125 = vshrl.u32 %v124, 7
  %v126 = vsub.s32 3, %v125
  %v127 = vrot.slane %v29, %v126
  %v148 = vpack.c.bf16 %v51, %v51
  %v149 = vpack.c.bf16 %v55, %v55
  %v150 = vpack.c.bf16 %v59, %v59
  %v151 = vpack.c.bf16 %v63, %v63
  %v152 = vpack.c.bf16 %v67, %v67
  %v153 = vpack.c.bf16 %v71, %v71
  %v154 = vpack.c.bf16 %v75, %v75
  %v155 = vpack.c.bf16 %v79, %v79
  %v156 = vpack.c.bf16 %v83, %v83
  %v157 = vpack.c.bf16 %v87, %v87
  %v158 = vpack.c.bf16 %v91, %v91
  %v159 = vpack.c.bf16 %v95, %v95
  %v160 = vpack.c.bf16 %v99, %v99
  %v161 = vpack.c.bf16 %v103, %v103
  %v162 = vpack.c.bf16 %v107, %v107
  %v163 = vpack.c.bf16 %v111, %v111
  %v164 = vpack.c.bf16 %v115, %v115
  %v165 = vpack.c.bf16 %v119, %v119
  %v166 = vpack.c.bf16 %v123, %v123
  %v167 = vpack.c.bf16 %v127, %v127
  %v168 = vld [vmem:[%s3] sm:$0xf]
  %v169 = vld [vmem:[%s3 + $0x4] sm:$0xf]
  %v170 = vld [vmem:[%s3 + $0x8] sm:$0xf]
  %v171 = vld [vmem:[%s3 + $0xc] sm:$0xf]
  %v172 = vld [vmem:[%s3 + $0x10] sm:$0xf]
  %v173 = vld [vmem:[%s3 + $0x14] sm:$0xf]
  %v174 = vld [vmem:[%s3 + $0x18] sm:$0xf]
  %v175 = vld [vmem:[%s3 + $0x1c] sm:$0xf]
  %v176 = vld [vmem:[%s3 + $0x20] sm:$0xf]
  %v177 = vld [vmem:[%s3 + $0x24] sm:$0xf]
  %v178 = vld [vmem:[%s3 + $0x28] sm:$0xf]
  %v179 = vld [vmem:[%s3 + $0x2c] sm:$0xf]
  %v180 = vld [vmem:[%s3 + $0x30] sm:$0xf]
  %v181 = vld [vmem:[%s3 + $0x34] sm:$0xf]
  %v182 = vld [vmem:[%s3 + $0x38] sm:$0xf]
  %v183 = vld [vmem:[%s3 + $0x3c] sm:$0xf]
  %v184 = vld [vmem:[%s3 + $0x40] sm:$0xf]
  %v185 = vld [vmem:[%s3 + $0x44] sm:$0xf]
  %v186 = vld [vmem:[%s3 + $0x48] sm:$0xf]
  %v187 = vld [vmem:[%s3 + $0x4c] sm:$0xf]
  %v188 = vld [vmem:[%s3 + $0x50] sm:$0xf]
  %v189 = vld [vmem:[%s3 + $0x54] sm:$0xf]
  %v190 = vld [vmem:[%s3 + $0x58] sm:$0xf]
  %v191 = vld [vmem:[%s3 + $0x5c] sm:$0xf]
  %v192 = vld [vmem:[%s3 + $0x60] sm:$0xf]
  %v193 = vld [vmem:[%s3 + $0x64] sm:$0xf]
  %v194 = vld [vmem:[%s3 + $0x68] sm:$0xf]
  %v195 = vld [vmem:[%s3 + $0x6c] sm:$0xf]
  %v196 = vld [vmem:[%s3 + $0x70] sm:$0xf]
  %v197 = vld [vmem:[%s3 + $0x74] sm:$0xf]
  %v198 = vld [vmem:[%s3 + $0x78] sm:$0xf]
  %v199 = vld [vmem:[%s3 + $0x7c] sm:$0xf]
  %v200 = vld [vmem:[%s3 + $0x80] sm:$0xf]
  %v201 = vld [vmem:[%s3 + $0x84] sm:$0xf]
  %v202 = vld [vmem:[%s3 + $0x88] sm:$0xf]
  %v203 = vld [vmem:[%s3 + $0x8c] sm:$0xf]
  %v204 = vld [vmem:[%s3 + $0x90] sm:$0xf]
  %v205 = vld [vmem:[%s3 + $0x94] sm:$0xf]
  %v206 = vld [vmem:[%s3 + $0x98] sm:$0xf]
  %v207 = vld [vmem:[%s3 + $0x9c] sm:$0xf]
  %v208 = vld [vmem:[%s3 + $0xa0] sm:$0xf]
  %v209 = vld [vmem:[%s3 + $0xa4] sm:$0xf]
  %v210 = vld [vmem:[%s3 + $0xa8] sm:$0xf]
  %v211 = vld [vmem:[%s3 + $0xac] sm:$0xf]
  %v212 = vld [vmem:[%s3 + $0xb0] sm:$0xf]
  %v213 = vld [vmem:[%s3 + $0xb4] sm:$0xf]
  %v214 = vld [vmem:[%s3 + $0xb8] sm:$0xf]
  %v215 = vld [vmem:[%s3 + $0xbc] sm:$0xf]
  %v216 = vld [vmem:[%s3 + $0xc0] sm:$0xf]
  %v217 = vld [vmem:[%s3 + $0xc4] sm:$0xf]
  %v218 = vld [vmem:[%s3 + $0xc8] sm:$0xf]
  %v219 = vld [vmem:[%s3 + $0xcc] sm:$0xf]
  %v220 = vld [vmem:[%s3 + $0xd0] sm:$0xf]
  %v221 = vld [vmem:[%s3 + $0xd4] sm:$0xf]
  %v222 = vld [vmem:[%s3 + $0xd8] sm:$0xf]
  %v223 = vld [vmem:[%s3 + $0xdc] sm:$0xf]
  %v224 = vld [vmem:[%s3 + $0xe0] sm:$0xf]
  %v225 = vld [vmem:[%s3 + $0xe4] sm:$0xf]
  %v226 = vld [vmem:[%s3 + $0xe8] sm:$0xf]
  %v227 = vld [vmem:[%s3 + $0xec] sm:$0xf]
  %v228 = vld [vmem:[%s3 + $0xf0] sm:$0xf]
  %v229 = vld [vmem:[%s3 + $0xf4] sm:$0xf]
  %v230 = vld [vmem:[%s3 + $0xf8] sm:$0xf]
  %v231 = vld [vmem:[%s3 + $0xfc] sm:$0xf]
  %v232 = vld [vmem:[%s3 + $0x100] sm:$0xf]
  %v233 = vld [vmem:[%s3 + $0x104] sm:$0xf]
  %v234 = vld [vmem:[%s3 + $0x108] sm:$0xf]
  %v235 = vld [vmem:[%s3 + $0x10c] sm:$0xf]
  %v236 = vld [vmem:[%s3 + $0x110] sm:$0xf]
  %v237 = vld [vmem:[%s3 + $0x114] sm:$0xf]
  %v238 = vld [vmem:[%s3 + $0x118] sm:$0xf]
  %v239 = vld [vmem:[%s3 + $0x11c] sm:$0xf]
  %v240 = vld [vmem:[%s3 + $0x120] sm:$0xf]
  %v241 = vld [vmem:[%s3 + $0x124] sm:$0xf]
  %v242 = vld [vmem:[%s3 + $0x128] sm:$0xf]
  %v243 = vld [vmem:[%s3 + $0x12c] sm:$0xf]
  %v244 = vld [vmem:[%s3 + $0x130] sm:$0xf]
  %v245 = vld [vmem:[%s3 + $0x134] sm:$0xf]
  %v246 = vld [vmem:[%s3 + $0x138] sm:$0xf]
  %v247 = vld [vmem:[%s3 + $0x13c] sm:$0xf]
  %v248 = vld [vmem:[%s3 + $0x140] sm:$0xf]
  %v249 = vld [vmem:[%s3 + $0x144] sm:$0xf]
  %v250 = vld [vmem:[%s3 + $0x148] sm:$0xf]
  %v251 = vld [vmem:[%s3 + $0x14c] sm:$0xf]
  %v252 = vld [vmem:[%s3 + $0x150] sm:$0xf]
  %v253 = vld [vmem:[%s3 + $0x154] sm:$0xf]
  %v254 = vld [vmem:[%s3 + $0x158] sm:$0xf]
  %v255 = vld [vmem:[%s3 + $0x15c] sm:$0xf]
  %v256 = vld [vmem:[%s3 + $0x160] sm:$0xf]
  %v257 = vld [vmem:[%s3 + $0x164] sm:$0xf]
  %v258 = vld [vmem:[%s3 + $0x168] sm:$0xf]
  %v259 = vld [vmem:[%s3 + $0x16c] sm:$0xf]
  %v260 = vld [vmem:[%s3 + $0x170] sm:$0xf]
  %v261 = vld [vmem:[%s3 + $0x174] sm:$0xf]
  %v262 = vld [vmem:[%s3 + $0x178] sm:$0xf]
  %v263 = vld [vmem:[%s3 + $0x17c] sm:$0xf]
  %v264 = vld [vmem:[%s3 + $0x180] sm:$0xf]
  %v265 = vld [vmem:[%s3 + $0x184] sm:$0xf]
  %v266 = vld [vmem:[%s3 + $0x188] sm:$0xf]
  %v267 = vld [vmem:[%s3 + $0x18c] sm:$0xf]
  %v268 = vld [vmem:[%s3 + $0x190] sm:$0xf]
  %v269 = vld [vmem:[%s3 + $0x194] sm:$0xf]
  %v270 = vld [vmem:[%s3 + $0x198] sm:$0xf]
  %v271 = vld [vmem:[%s3 + $0x19c] sm:$0xf]
  %v272 = vld [vmem:[%s3 + $0x1a0] sm:$0xf]
  %v273 = vld [vmem:[%s3 + $0x1a4] sm:$0xf]
  %v274 = vld [vmem:[%s3 + $0x1a8] sm:$0xf]
  %v275 = vld [vmem:[%s3 + $0x1ac] sm:$0xf]
  %v276 = vld [vmem:[%s3 + $0x1b0] sm:$0xf]
  %v277 = vld [vmem:[%s3 + $0x1b4] sm:$0xf]
  %v278 = vld [vmem:[%s3 + $0x1b8] sm:$0xf]
  %v279 = vld [vmem:[%s3 + $0x1bc] sm:$0xf]
  %v280 = vld [vmem:[%s3 + $0x1c0] sm:$0xf]
  %v281 = vld [vmem:[%s3 + $0x1c4] sm:$0xf]
  %v282 = vld [vmem:[%s3 + $0x1c8] sm:$0xf]
  %v283 = vld [vmem:[%s3 + $0x1cc] sm:$0xf]
  %v284 = vld [vmem:[%s3 + $0x1d0] sm:$0xf]
  %v285 = vld [vmem:[%s3 + $0x1d4] sm:$0xf]
  %v286 = vld [vmem:[%s3 + $0x1d8] sm:$0xf]
  %v287 = vld [vmem:[%s3 + $0x1dc] sm:$0xf]
  %v288 = vld [vmem:[%s3 + $0x1e0] sm:$0xf]
  %v289 = vld [vmem:[%s3 + $0x1e4] sm:$0xf]
  %v290 = vld [vmem:[%s3 + $0x1e8] sm:$0xf]
  %v291 = vld [vmem:[%s3 + $0x1ec] sm:$0xf]
  %v292 = vld [vmem:[%s3 + $0x1f0] sm:$0xf]
  %v293 = vld [vmem:[%s3 + $0x1f4] sm:$0xf]
  %v294 = vld [vmem:[%s3 + $0x1f8] sm:$0xf]
  %v295 = vld [vmem:[%s3 + $0x1fc] sm:$0xf]
  %v296 = vld [vmem:[%s3 + $0x200] sm:$0xf]
  %v297 = vld [vmem:[%s3 + $0x204] sm:$0xf]
  %v298 = vld [vmem:[%s3 + $0x208] sm:$0xf]
  %v299 = vld [vmem:[%s3 + $0x20c] sm:$0xf]
  %v300 = vld [vmem:[%s3 + $0x210] sm:$0xf]
  %v301 = vld [vmem:[%s3 + $0x214] sm:$0xf]
  %v302 = vld [vmem:[%s3 + $0x218] sm:$0xf]
  %v303 = vld [vmem:[%s3 + $0x21c] sm:$0xf]
  %v304 = vld [vmem:[%s3 + $0x220] sm:$0xf]
  %v305 = vld [vmem:[%s3 + $0x224] sm:$0xf]
  %v306 = vld [vmem:[%s3 + $0x228] sm:$0xf]
  %v307 = vld [vmem:[%s3 + $0x22c] sm:$0xf]
  %v308 = vld [vmem:[%s3 + $0x230] sm:$0xf]
  %v309 = vld [vmem:[%s3 + $0x234] sm:$0xf]
  %v310 = vld [vmem:[%s3 + $0x238] sm:$0xf]
  %v311 = vld [vmem:[%s3 + $0x23c] sm:$0xf]
  %v312 = vld [vmem:[%s3 + $0x240] sm:$0xf]
  %v313 = vld [vmem:[%s3 + $0x244] sm:$0xf]
  %v314 = vld [vmem:[%s3 + $0x248] sm:$0xf]
  %v315 = vld [vmem:[%s3 + $0x24c] sm:$0xf]
  %v316 = vld [vmem:[%s3 + $0x250] sm:$0xf]
  %v317 = vld [vmem:[%s3 + $0x254] sm:$0xf]
  %v318 = vld [vmem:[%s3 + $0x258] sm:$0xf]
  %v319 = vld [vmem:[%s3 + $0x25c] sm:$0xf]
  %v320 = vld [vmem:[%s3 + $0x260] sm:$0xf]
  %v321 = vld [vmem:[%s3 + $0x264] sm:$0xf]
  %v322 = vld [vmem:[%s3 + $0x268] sm:$0xf]
  %v323 = vld [vmem:[%s3 + $0x26c] sm:$0xf]
  %v324 = vld [vmem:[%s3 + $0x270] sm:$0xf]
  %v325 = vld [vmem:[%s3 + $0x274] sm:$0xf]
  %v326 = vld [vmem:[%s3 + $0x278] sm:$0xf]
  %v327 = vld [vmem:[%s3 + $0x27c] sm:$0xf]
  %v328 = vld [vmem:[%s3 + $0x280] sm:$0xf]
  %v329 = vld [vmem:[%s3 + $0x284] sm:$0xf]
  %v330 = vld [vmem:[%s3 + $0x288] sm:$0xf]
  %v331 = vld [vmem:[%s3 + $0x28c] sm:$0xf]
  %v332 = vld [vmem:[%s3 + $0x290] sm:$0xf]
  %v333 = vld [vmem:[%s3 + $0x294] sm:$0xf]
  %v334 = vld [vmem:[%s3 + $0x298] sm:$0xf]
  %v335 = vld [vmem:[%s3 + $0x29c] sm:$0xf]
  %v336 = vld [vmem:[%s3 + $0x2a0] sm:$0xf]
  %v337 = vld [vmem:[%s3 + $0x2a4] sm:$0xf]
  %v338 = vld [vmem:[%s3 + $0x2a8] sm:$0xf]
  %v339 = vld [vmem:[%s3 + $0x2ac] sm:$0xf]
  %v340 = vld [vmem:[%s3 + $0x2b0] sm:$0xf]
  %v341 = vld [vmem:[%s3 + $0x2b4] sm:$0xf]
  %v342 = vld [vmem:[%s3 + $0x2b8] sm:$0xf]
  %v343 = vld [vmem:[%s3 + $0x2bc] sm:$0xf]
  %v344 = vld [vmem:[%s3 + $0x2c0] sm:$0xf]
  %v345 = vld [vmem:[%s3 + $0x2c4] sm:$0xf]
  %v346 = vld [vmem:[%s3 + $0x2c8] sm:$0xf]
  %v347 = vld [vmem:[%s3 + $0x2cc] sm:$0xf]
  %v348 = vld [vmem:[%s3 + $0x2d0] sm:$0xf]
  %v349 = vld [vmem:[%s3 + $0x2d4] sm:$0xf]
  %v350 = vld [vmem:[%s3 + $0x2d8] sm:$0xf]
  %v351 = vld [vmem:[%s3 + $0x2dc] sm:$0xf]
  %v352 = vld [vmem:[%s3 + $0x2e0] sm:$0xf]
  %v353 = vld [vmem:[%s3 + $0x2e4] sm:$0xf]
  %v354 = vld [vmem:[%s3 + $0x2e8] sm:$0xf]
  %v355 = vld [vmem:[%s3 + $0x2ec] sm:$0xf]
  %v356 = vld [vmem:[%s3 + $0x2f0] sm:$0xf]
  %v357 = vld [vmem:[%s3 + $0x2f4] sm:$0xf]
  %v358 = vld [vmem:[%s3 + $0x2f8] sm:$0xf]
  %v359 = vld [vmem:[%s3 + $0x2fc] sm:$0xf]
  %v360 = vld [vmem:[%s3 + $0x300] sm:$0xf]
  %v361 = vld [vmem:[%s3 + $0x304] sm:$0xf]
  %v362 = vld [vmem:[%s3 + $0x308] sm:$0xf]
  %v363 = vld [vmem:[%s3 + $0x30c] sm:$0xf]
  %v364 = vld [vmem:[%s3 + $0x310] sm:$0xf]
  %v365 = vld [vmem:[%s3 + $0x314] sm:$0xf]
  %v366 = vld [vmem:[%s3 + $0x318] sm:$0xf]
  %v367 = vld [vmem:[%s3 + $0x31c] sm:$0xf]
  %v368 = vld [vmem:[%s3 + $0x320] sm:$0xf]
  %v369 = vld [vmem:[%s3 + $0x324] sm:$0xf]
  %v370 = vld [vmem:[%s3 + $0x328] sm:$0xf]
  %v371 = vld [vmem:[%s3 + $0x32c] sm:$0xf]
  %v372 = vld [vmem:[%s3 + $0x330] sm:$0xf]
  %v373 = vld [vmem:[%s3 + $0x334] sm:$0xf]
  %v374 = vld [vmem:[%s3 + $0x338] sm:$0xf]
  %v375 = vld [vmem:[%s3 + $0x33c] sm:$0xf]
  %v376 = vld [vmem:[%s3 + $0x340] sm:$0xf]
  %v377 = vld [vmem:[%s3 + $0x344] sm:$0xf]
  %v378 = vld [vmem:[%s3 + $0x348] sm:$0xf]
  %v379 = vld [vmem:[%s3 + $0x34c] sm:$0xf]
  %v380 = vld [vmem:[%s3 + $0x350] sm:$0xf]
  %v381 = vld [vmem:[%s3 + $0x354] sm:$0xf]
  %v382 = vld [vmem:[%s3 + $0x358] sm:$0xf]
  %v383 = vld [vmem:[%s3 + $0x35c] sm:$0xf]
  %v384 = vld [vmem:[%s3 + $0x360] sm:$0xf]
  %v385 = vld [vmem:[%s3 + $0x364] sm:$0xf]
  %v386 = vld [vmem:[%s3 + $0x368] sm:$0xf]
  %v387 = vld [vmem:[%s3 + $0x36c] sm:$0xf]
  %v388 = vld [vmem:[%s3 + $0x370] sm:$0xf]
  %v389 = vld [vmem:[%s3 + $0x374] sm:$0xf]
  %v390 = vld [vmem:[%s3 + $0x378] sm:$0xf]
  %v391 = vld [vmem:[%s3 + $0x37c] sm:$0xf]
  %v392 = vld [vmem:[%s3 + $0x380] sm:$0xf]
  %v393 = vld [vmem:[%s3 + $0x384] sm:$0xf]
  %v394 = vld [vmem:[%s3 + $0x388] sm:$0xf]
  %v395 = vld [vmem:[%s3 + $0x38c] sm:$0xf]
  %v396 = vld [vmem:[%s3 + $0x390] sm:$0xf]
  %v397 = vld [vmem:[%s3 + $0x394] sm:$0xf]
  %v398 = vld [vmem:[%s3 + $0x398] sm:$0xf]
  %v399 = vld [vmem:[%s3 + $0x39c] sm:$0xf]
  %v400 = vld [vmem:[%s3 + $0x3a0] sm:$0xf]
  %v401 = vld [vmem:[%s3 + $0x3a4] sm:$0xf]
  %v402 = vld [vmem:[%s3 + $0x3a8] sm:$0xf]
  %v403 = vld [vmem:[%s3 + $0x3ac] sm:$0xf]
  %v404 = vld [vmem:[%s3 + $0x3b0] sm:$0xf]
  %v405 = vld [vmem:[%s3 + $0x3b4] sm:$0xf]
  %v406 = vld [vmem:[%s3 + $0x3b8] sm:$0xf]
  %v407 = vld [vmem:[%s3 + $0x3bc] sm:$0xf]
  %v408 = vld [vmem:[%s3 + $0x3c0] sm:$0xf]
  %v409 = vld [vmem:[%s3 + $0x3c4] sm:$0xf]
  %v410 = vld [vmem:[%s3 + $0x3c8] sm:$0xf]
  %v411 = vld [vmem:[%s3 + $0x3cc] sm:$0xf]
  %v412 = vld [vmem:[%s3 + $0x3d0] sm:$0xf]
  %v413 = vld [vmem:[%s3 + $0x3d4] sm:$0xf]
  %v414 = vld [vmem:[%s3 + $0x3d8] sm:$0xf]
  %v415 = vld [vmem:[%s3 + $0x3dc] sm:$0xf]
  %v416 = vld [vmem:[%s3 + $0x3e0] sm:$0xf]
  %v417 = vld [vmem:[%s3 + $0x3e4] sm:$0xf]
  %v418 = vld [vmem:[%s3 + $0x3e8] sm:$0xf]
  %v419 = vld [vmem:[%s3 + $0x3ec] sm:$0xf]
  %v420 = vld [vmem:[%s3 + $0x3f0] sm:$0xf]
  %v421 = vld [vmem:[%s3 + $0x3f4] sm:$0xf]
  %v422 = vld [vmem:[%s3 + $0x3f8] sm:$0xf]
  %v423 = vld [vmem:[%s3 + $0x3fc] sm:$0xf]
  %v424 = vld [vmem:[%s3 + $0x400] sm:$0xf]
  %v425 = vld [vmem:[%s3 + $0x404] sm:$0xf]
  %v426 = vld [vmem:[%s3 + $0x408] sm:$0xf]
  %v427 = vld [vmem:[%s3 + $0x40c] sm:$0xf]
  %v428 = vld [vmem:[%s3 + $0x410] sm:$0xf]
  %v429 = vld [vmem:[%s3 + $0x414] sm:$0xf]
  %v430 = vld [vmem:[%s3 + $0x418] sm:$0xf]
  %v431 = vld [vmem:[%s3 + $0x41c] sm:$0xf]
  %v432 = vld [vmem:[%s3 + $0x420] sm:$0xf]
  %v433 = vld [vmem:[%s3 + $0x424] sm:$0xf]
  %v434 = vld [vmem:[%s3 + $0x428] sm:$0xf]
  %v435 = vld [vmem:[%s3 + $0x42c] sm:$0xf]
  %v436 = vld [vmem:[%s3 + $0x430] sm:$0xf]
  %v437 = vld [vmem:[%s3 + $0x434] sm:$0xf]
  %v438 = vld [vmem:[%s3 + $0x438] sm:$0xf]
  %v439 = vld [vmem:[%s3 + $0x43c] sm:$0xf]
  %v440 = vld [vmem:[%s3 + $0x440] sm:$0xf]
  %v441 = vld [vmem:[%s3 + $0x444] sm:$0xf]
  %v442 = vld [vmem:[%s3 + $0x448] sm:$0xf]
  %v443 = vld [vmem:[%s3 + $0x44c] sm:$0xf]
  %v444 = vld [vmem:[%s3 + $0x450] sm:$0xf]
  %v445 = vld [vmem:[%s3 + $0x454] sm:$0xf]
  %v446 = vld [vmem:[%s3 + $0x458] sm:$0xf]
  %v447 = vld [vmem:[%s3 + $0x45c] sm:$0xf]
  %v448 = vld [vmem:[%s3 + $0x460] sm:$0xf]
  %v449 = vld [vmem:[%s3 + $0x464] sm:$0xf]
  %v450 = vld [vmem:[%s3 + $0x468] sm:$0xf]
  %v451 = vld [vmem:[%s3 + $0x46c] sm:$0xf]
  %v452 = vld [vmem:[%s3 + $0x470] sm:$0xf]
  %v453 = vld [vmem:[%s3 + $0x474] sm:$0xf]
  %v454 = vld [vmem:[%s3 + $0x478] sm:$0xf]
  %v455 = vld [vmem:[%s3 + $0x47c] sm:$0xf]
  %v456 = vld [vmem:[%s3 + $0x480] sm:$0xf]
  %v457 = vld [vmem:[%s3 + $0x484] sm:$0xf]
  %v458 = vld [vmem:[%s3 + $0x488] sm:$0xf]
  %v459 = vld [vmem:[%s3 + $0x48c] sm:$0xf]
  %v460 = vld [vmem:[%s3 + $0x490] sm:$0xf]
  %v461 = vld [vmem:[%s3 + $0x494] sm:$0xf]
  %v462 = vld [vmem:[%s3 + $0x498] sm:$0xf]
  %v463 = vld [vmem:[%s3 + $0x49c] sm:$0xf]
  %v464 = vld [vmem:[%s3 + $0x4a0] sm:$0xf]
  %v465 = vld [vmem:[%s3 + $0x4a4] sm:$0xf]
  %v466 = vld [vmem:[%s3 + $0x4a8] sm:$0xf]
  %v467 = vld [vmem:[%s3 + $0x4ac] sm:$0xf]
  %v468 = vld [vmem:[%s3 + $0x4b0] sm:$0xf]
  %v469 = vld [vmem:[%s3 + $0x4b4] sm:$0xf]
  %v470 = vld [vmem:[%s3 + $0x4b8] sm:$0xf]
  %v471 = vld [vmem:[%s3 + $0x4bc] sm:$0xf]
  %v472 = vld [vmem:[%s3 + $0x4c0] sm:$0xf]
  %v473 = vld [vmem:[%s3 + $0x4c4] sm:$0xf]
  %v474 = vld [vmem:[%s3 + $0x4c8] sm:$0xf]
  %v475 = vld [vmem:[%s3 + $0x4cc] sm:$0xf]
  %v476 = vld [vmem:[%s3 + $0x4d0] sm:$0xf]
  %v477 = vld [vmem:[%s3 + $0x4d4] sm:$0xf]
  %v478 = vld [vmem:[%s3 + $0x4d8] sm:$0xf]
  %v479 = vld [vmem:[%s3 + $0x4dc] sm:$0xf]
  %v480 = vld [vmem:[%s3 + $0x4e0] sm:$0x3]
  %v794 = vunpack.c.l.b16 %v168
  %v795 = vunpack.c.l.b16 %v169
  %v796 = vunpack.c.l.b16 %v170
  %v797 = vunpack.c.l.b16 %v171
  %v798 = vunpack.c.l.b16 %v172
  %v799 = vunpack.c.l.b16 %v173
  %v800 = vunpack.c.l.b16 %v174
  %v801 = vunpack.c.l.b16 %v175
  %v802 = vunpack.c.l.b16 %v176
  %v803 = vunpack.c.l.b16 %v177
  %v804 = vunpack.c.l.b16 %v178
  %v805 = vunpack.c.l.b16 %v179
  %v806 = vunpack.c.l.b16 %v180
  %v807 = vunpack.c.l.b16 %v181
  %v808 = vunpack.c.l.b16 %v182
  %v809 = vunpack.c.l.b16 %v183
  %v810 = vunpack.c.l.b16 %v184
  %v811 = vunpack.c.l.b16 %v185
  %v812 = vunpack.c.l.b16 %v186
  %v813 = vunpack.c.l.b16 %v187
  %v814 = vunpack.c.l.b16 %v188
  %v815 = vunpack.c.l.b16 %v189
  %v816 = vunpack.c.l.b16 %v190
  %v817 = vunpack.c.l.b16 %v191
  %v818 = vunpack.c.l.b16 %v192
  %v819 = vunpack.c.l.b16 %v193
  %v820 = vunpack.c.l.b16 %v194
  %v821 = vunpack.c.l.b16 %v195
  %v822 = vunpack.c.l.b16 %v196
  %v823 = vunpack.c.l.b16 %v197
  %v824 = vunpack.c.l.b16 %v198
  %v825 = vunpack.c.l.b16 %v199
  %v826 = vunpack.c.l.b16 %v200
  %v827 = vunpack.c.l.b16 %v201
  %v828 = vunpack.c.l.b16 %v202
  %v829 = vunpack.c.l.b16 %v203
  %v830 = vunpack.c.l.b16 %v204
  %v831 = vunpack.c.l.b16 %v205
  %v832 = vunpack.c.l.b16 %v206
  %v833 = vunpack.c.l.b16 %v207
  %v834 = vunpack.c.l.b16 %v208
  %v835 = vunpack.c.l.b16 %v209
  %v836 = vunpack.c.l.b16 %v210
  %v837 = vunpack.c.l.b16 %v211
  %v838 = vunpack.c.l.b16 %v212
  %v839 = vunpack.c.l.b16 %v213
  %v840 = vunpack.c.l.b16 %v214
  %v841 = vunpack.c.l.b16 %v215
  %v842 = vunpack.c.l.b16 %v216
  %v843 = vunpack.c.l.b16 %v217
  %v844 = vunpack.c.l.b16 %v218
  %v845 = vunpack.c.l.b16 %v219
  %v846 = vunpack.c.l.b16 %v220
  %v847 = vunpack.c.l.b16 %v221
  %v848 = vunpack.c.l.b16 %v222
  %v849 = vunpack.c.l.b16 %v223
  %v850 = vunpack.c.l.b16 %v224
  %v851 = vunpack.c.l.b16 %v225
  %v852 = vunpack.c.l.b16 %v226
  %v853 = vunpack.c.l.b16 %v227
  %v854 = vunpack.c.l.b16 %v228
  %v855 = vunpack.c.l.b16 %v229
  %v856 = vunpack.c.l.b16 %v230
  %v857 = vunpack.c.l.b16 %v231
  %v858 = vunpack.c.l.b16 %v232
  %v859 = vunpack.c.l.b16 %v233
  %v860 = vunpack.c.l.b16 %v234
  %v861 = vunpack.c.l.b16 %v235
  %v862 = vunpack.c.l.b16 %v236
  %v863 = vunpack.c.l.b16 %v237
  %v864 = vunpack.c.l.b16 %v238
  %v865 = vunpack.c.l.b16 %v239
  %v866 = vunpack.c.l.b16 %v240
  %v867 = vunpack.c.l.b16 %v241
  %v868 = vunpack.c.l.b16 %v242
  %v869 = vunpack.c.l.b16 %v243
  %v870 = vunpack.c.l.b16 %v244
  %v871 = vunpack.c.l.b16 %v245
  %v872 = vunpack.c.l.b16 %v246
  %v873 = vunpack.c.l.b16 %v247
  %v874 = vunpack.c.l.b16 %v248
  %v875 = vunpack.c.l.b16 %v249
  %v876 = vunpack.c.l.b16 %v250
  %v877 = vunpack.c.l.b16 %v251
  %v878 = vunpack.c.l.b16 %v252
  %v879 = vunpack.c.l.b16 %v253
  %v880 = vunpack.c.l.b16 %v254
  %v881 = vunpack.c.l.b16 %v255
  %v882 = vunpack.c.l.b16 %v256
  %v883 = vunpack.c.l.b16 %v257
  %v884 = vunpack.c.l.b16 %v258
  %v885 = vunpack.c.l.b16 %v259
  %v886 = vunpack.c.l.b16 %v260
  %v887 = vunpack.c.l.b16 %v261
  %v888 = vunpack.c.l.b16 %v262
  %v889 = vunpack.c.l.b16 %v263
  %v890 = vunpack.c.l.b16 %v264
  %v891 = vunpack.c.l.b16 %v265
  %v892 = vunpack.c.l.b16 %v266
  %v893 = vunpack.c.l.b16 %v267
  %v894 = vunpack.c.l.b16 %v268
  %v895 = vunpack.c.l.b16 %v269
  %v896 = vunpack.c.l.b16 %v270
  %v897 = vunpack.c.l.b16 %v271
  %v898 = vunpack.c.l.b16 %v272
  %v899 = vunpack.c.l.b16 %v273
  %v900 = vunpack.c.l.b16 %v274
  %v901 = vunpack.c.l.b16 %v275
  %v902 = vunpack.c.l.b16 %v276
  %v903 = vunpack.c.l.b16 %v277
  %v904 = vunpack.c.l.b16 %v278
  %v905 = vunpack.c.l.b16 %v279
  %v906 = vunpack.c.l.b16 %v280
  %v907 = vunpack.c.l.b16 %v281
  %v908 = vunpack.c.l.b16 %v282
  %v909 = vunpack.c.l.b16 %v283
  %v910 = vunpack.c.l.b16 %v284
  %v911 = vunpack.c.l.b16 %v285
  %v912 = vunpack.c.l.b16 %v286
  %v913 = vunpack.c.l.b16 %v287
  %v914 = vunpack.c.l.b16 %v288
  %v915 = vunpack.c.l.b16 %v289
  %v916 = vunpack.c.l.b16 %v290
  %v917 = vunpack.c.l.b16 %v291
  %v918 = vunpack.c.l.b16 %v292
  %v919 = vunpack.c.l.b16 %v293
  %v920 = vunpack.c.l.b16 %v294
  %v921 = vunpack.c.l.b16 %v295
  %v922 = vunpack.c.l.b16 %v296
  %v923 = vunpack.c.l.b16 %v297
  %v924 = vunpack.c.l.b16 %v298
  %v925 = vunpack.c.l.b16 %v299
  %v926 = vunpack.c.l.b16 %v300
  %v927 = vunpack.c.l.b16 %v301
  %v928 = vunpack.c.l.b16 %v302
  %v929 = vunpack.c.l.b16 %v303
  %v930 = vunpack.c.l.b16 %v304
  %v931 = vunpack.c.l.b16 %v305
  %v932 = vunpack.c.l.b16 %v306
  %v933 = vunpack.c.l.b16 %v307
  %v934 = vunpack.c.l.b16 %v308
  %v935 = vunpack.c.l.b16 %v309
  %v936 = vunpack.c.l.b16 %v310
  %v937 = vunpack.c.l.b16 %v311
  %v938 = vunpack.c.l.b16 %v312
  %v939 = vunpack.c.l.b16 %v313
  %v940 = vunpack.c.l.b16 %v314
  %v941 = vunpack.c.l.b16 %v315
  %v942 = vunpack.c.l.b16 %v316
  %v943 = vunpack.c.l.b16 %v317
  %v944 = vunpack.c.l.b16 %v318
  %v945 = vunpack.c.l.b16 %v319
  %v946 = vunpack.c.l.b16 %v320
  %v947 = vunpack.c.l.b16 %v321
  %v948 = vunpack.c.l.b16 %v322
  %v949 = vunpack.c.l.b16 %v323
  %v950 = vunpack.c.l.b16 %v324
  %v951 = vunpack.c.l.b16 %v325
  %v952 = vunpack.c.l.b16 %v326
  %v953 = vunpack.c.l.b16 %v327
  %v954 = vunpack.c.l.b16 %v328
  %v955 = vunpack.c.l.b16 %v329
  %v956 = vunpack.c.l.b16 %v330
  %v957 = vunpack.c.l.b16 %v331
  %v958 = vunpack.c.l.b16 %v332
  %v959 = vunpack.c.l.b16 %v333
  %v960 = vunpack.c.l.b16 %v334
  %v961 = vunpack.c.l.b16 %v335
  %v962 = vunpack.c.l.b16 %v336
  %v963 = vunpack.c.l.b16 %v337
  %v964 = vunpack.c.l.b16 %v338
  %v965 = vunpack.c.l.b16 %v339
  %v966 = vunpack.c.l.b16 %v340
  %v967 = vunpack.c.l.b16 %v341
  %v968 = vunpack.c.l.b16 %v342
  %v969 = vunpack.c.l.b16 %v343
  %v970 = vunpack.c.l.b16 %v344
  %v971 = vunpack.c.l.b16 %v345
  %v972 = vunpack.c.l.b16 %v346
  %v973 = vunpack.c.l.b16 %v347
  %v974 = vunpack.c.l.b16 %v348
  %v975 = vunpack.c.l.b16 %v349
  %v976 = vunpack.c.l.b16 %v350
  %v977 = vunpack.c.l.b16 %v351
  %v978 = vunpack.c.l.b16 %v352
  %v979 = vunpack.c.l.b16 %v353
  %v980 = vunpack.c.l.b16 %v354
  %v981 = vunpack.c.l.b16 %v355
  %v982 = vunpack.c.l.b16 %v356
  %v983 = vunpack.c.l.b16 %v357
  %v984 = vunpack.c.l.b16 %v358
  %v985 = vunpack.c.l.b16 %v359
  %v986 = vunpack.c.l.b16 %v360
  %v987 = vunpack.c.l.b16 %v361
  %v988 = vunpack.c.l.b16 %v362
  %v989 = vunpack.c.l.b16 %v363
  %v990 = vunpack.c.l.b16 %v364
  %v991 = vunpack.c.l.b16 %v365
  %v992 = vunpack.c.l.b16 %v366
  %v993 = vunpack.c.l.b16 %v367
  %v994 = vunpack.c.l.b16 %v368
  %v995 = vunpack.c.l.b16 %v369
  %v996 = vunpack.c.l.b16 %v370
  %v997 = vunpack.c.l.b16 %v371
  %v998 = vunpack.c.l.b16 %v372
  %v999 = vunpack.c.l.b16 %v373
  %v1000 = vunpack.c.l.b16 %v374
  %v1001 = vunpack.c.l.b16 %v375
  %v1002 = vunpack.c.l.b16 %v376
  %v1003 = vunpack.c.l.b16 %v377
  %v1004 = vunpack.c.l.b16 %v378
  %v1005 = vunpack.c.l.b16 %v379
  %v1006 = vunpack.c.l.b16 %v380
  %v1007 = vunpack.c.l.b16 %v381
  %v1008 = vunpack.c.l.b16 %v382
  %v1009 = vunpack.c.l.b16 %v383
  %v1010 = vunpack.c.l.b16 %v384
  %v1011 = vunpack.c.l.b16 %v385
  %v1012 = vunpack.c.l.b16 %v386
  %v1013 = vunpack.c.l.b16 %v387
  %v1014 = vunpack.c.l.b16 %v388
  %v1015 = vunpack.c.l.b16 %v389
  %v1016 = vunpack.c.l.b16 %v390
  %v1017 = vunpack.c.l.b16 %v391
  %v1018 = vunpack.c.l.b16 %v392
  %v1019 = vunpack.c.l.b16 %v393
  %v1020 = vunpack.c.l.b16 %v394
  %v1021 = vunpack.c.l.b16 %v395
  %v1022 = vunpack.c.l.b16 %v396
  %v1023 = vunpack.c.l.b16 %v397
  %v1024 = vunpack.c.l.b16 %v398
  %v1025 = vunpack.c.l.b16 %v399
  %v1026 = vunpack.c.l.b16 %v400
  %v1027 = vunpack.c.l.b16 %v401
  %v1028 = vunpack.c.l.b16 %v402
  %v1029 = vunpack.c.l.b16 %v403
  %v1030 = vunpack.c.l.b16 %v404
  %v1031 = vunpack.c.l.b16 %v405
  %v1032 = vunpack.c.l.b16 %v406
  %v1033 = vunpack.c.l.b16 %v407
  %v1034 = vunpack.c.l.b16 %v408
  %v1035 = vunpack.c.l.b16 %v409
  %v1036 = vunpack.c.l.b16 %v410
  %v1037 = vunpack.c.l.b16 %v411
  %v1038 = vunpack.c.l.b16 %v412
  %v1039 = vunpack.c.l.b16 %v413
  %v1040 = vunpack.c.l.b16 %v414
  %v1041 = vunpack.c.l.b16 %v415
  %v1042 = vunpack.c.l.b16 %v416
  %v1043 = vunpack.c.l.b16 %v417
  %v1044 = vunpack.c.l.b16 %v418
  %v1045 = vunpack.c.l.b16 %v419
  %v1046 = vunpack.c.l.b16 %v420
  %v1047 = vunpack.c.l.b16 %v421
  %v1048 = vunpack.c.l.b16 %v422
  %v1049 = vunpack.c.l.b16 %v423
  %v1050 = vunpack.c.l.b16 %v424
  %v1051 = vunpack.c.l.b16 %v425
  %v1052 = vunpack.c.l.b16 %v426
  %v1053 = vunpack.c.l.b16 %v427
  %v1054 = vunpack.c.l.b16 %v428
  %v1055 = vunpack.c.l.b16 %v429
  %v1056 = vunpack.c.l.b16 %v430
  %v1057 = vunpack.c.l.b16 %v431
  %v1058 = vunpack.c.l.b16 %v432
  %v1059 = vunpack.c.l.b16 %v433
  %v1060 = vunpack.c.l.b16 %v434
  %v1061 = vunpack.c.l.b16 %v435
  %v1062 = vunpack.c.l.b16 %v436
  %v1063 = vunpack.c.l.b16 %v437
  %v1064 = vunpack.c.l.b16 %v438
  %v1065 = vunpack.c.l.b16 %v439
  %v1066 = vunpack.c.l.b16 %v440
  %v1067 = vunpack.c.l.b16 %v441
  %v1068 = vunpack.c.l.b16 %v442
  %v1069 = vunpack.c.l.b16 %v443
  %v1070 = vunpack.c.l.b16 %v444
  %v1071 = vunpack.c.l.b16 %v445
  %v1072 = vunpack.c.l.b16 %v446
  %v1073 = vunpack.c.l.b16 %v447
  %v1074 = vunpack.c.l.b16 %v448
  %v1075 = vunpack.c.l.b16 %v449
  %v1076 = vunpack.c.l.b16 %v450
  %v1077 = vunpack.c.l.b16 %v451
  %v1078 = vunpack.c.l.b16 %v452
  %v1079 = vunpack.c.l.b16 %v453
  %v1080 = vunpack.c.l.b16 %v454
  %v1081 = vunpack.c.l.b16 %v455
  %v1082 = vunpack.c.l.b16 %v456
  %v1083 = vunpack.c.l.b16 %v457
  %v1084 = vunpack.c.l.b16 %v458
  %v1085 = vunpack.c.l.b16 %v459
  %v1086 = vunpack.c.l.b16 %v460
  %v1087 = vunpack.c.l.b16 %v461
  %v1088 = vunpack.c.l.b16 %v462
  %v1089 = vunpack.c.l.b16 %v463
  %v1090 = vunpack.c.l.b16 %v464
  %v1091 = vunpack.c.l.b16 %v465
  %v1092 = vunpack.c.l.b16 %v466
  %v1093 = vunpack.c.l.b16 %v467
  %v1094 = vunpack.c.l.b16 %v468
  %v1095 = vunpack.c.l.b16 %v469
  %v1096 = vunpack.c.l.b16 %v470
  %v1097 = vunpack.c.l.b16 %v471
  %v1098 = vunpack.c.l.b16 %v472
  %v1099 = vunpack.c.l.b16 %v473
  %v1100 = vunpack.c.l.b16 %v474
  %v1101 = vunpack.c.l.b16 %v475
  %v1102 = vunpack.c.l.b16 %v476
  %v1103 = vunpack.c.l.b16 %v477
  %v1104 = vunpack.c.l.b16 %v478
  %v1105 = vunpack.c.l.b16 %v479
  %v1106 = vunpack.c.l.b16 %v480
  %v1107 = vpack.c.b16 %v795, %v794
  %v1108 = vpack.c.b16 %v797, %v796
  %v1109 = vpack.c.b16 %v799, %v798
  %v1110 = vpack.c.b16 %v801, %v800
  %v1111 = vpack.c.b16 %v803, %v802
  %v1112 = vpack.c.b16 %v805, %v804
  %v1113 = vpack.c.b16 %v807, %v806
  %v1114 = vpack.c.b16 %v809, %v808
  %v1115 = vpack.c.b16 %v811, %v810
  %v1116 = vpack.c.b16 %v813, %v812
  %v1117 = vpack.c.b16 %v815, %v814
  %v1118 = vpack.c.b16 %v817, %v816
  %v1119 = vpack.c.b16 %v819, %v818
  %v1120 = vpack.c.b16 %v821, %v820
  %v1121 = vpack.c.b16 %v823, %v822
  %v1122 = vpack.c.b16 %v825, %v824
  %v1123 = vpack.c.b16 %v827, %v826
  %v1124 = vpack.c.b16 %v829, %v828
  %v1125 = vpack.c.b16 %v831, %v830
  %v1126 = vpack.c.b16 %v833, %v832
  %v1127 = vpack.c.b16 %v835, %v834
  %v1128 = vpack.c.b16 %v837, %v836
  %v1129 = vpack.c.b16 %v839, %v838
  %v1130 = vpack.c.b16 %v841, %v840
  %v1131 = vpack.c.b16 %v843, %v842
  %v1132 = vpack.c.b16 %v845, %v844
  %v1133 = vpack.c.b16 %v847, %v846
  %v1134 = vpack.c.b16 %v849, %v848
  %v1135 = vpack.c.b16 %v851, %v850
  %v1136 = vpack.c.b16 %v853, %v852
  %v1137 = vpack.c.b16 %v855, %v854
  %v1138 = vpack.c.b16 %v857, %v856
  %v1139 = vpack.c.b16 %v859, %v858
  %v1140 = vpack.c.b16 %v861, %v860
  %v1141 = vpack.c.b16 %v863, %v862
  %v1142 = vpack.c.b16 %v865, %v864
  %v1143 = vpack.c.b16 %v867, %v866
  %v1144 = vpack.c.b16 %v869, %v868
  %v1145 = vpack.c.b16 %v871, %v870
  %v1146 = vpack.c.b16 %v873, %v872
  %v1147 = vpack.c.b16 %v875, %v874
  %v1148 = vpack.c.b16 %v877, %v876
  %v1149 = vpack.c.b16 %v879, %v878
  %v1150 = vpack.c.b16 %v881, %v880
  %v1151 = vpack.c.b16 %v883, %v882
  %v1152 = vpack.c.b16 %v885, %v884
  %v1153 = vpack.c.b16 %v887, %v886
  %v1154 = vpack.c.b16 %v889, %v888
  %v1155 = vpack.c.b16 %v891, %v890
  %v1156 = vpack.c.b16 %v893, %v892
  %v1157 = vpack.c.b16 %v895, %v894
  %v1158 = vpack.c.b16 %v897, %v896
  %v1159 = vpack.c.b16 %v899, %v898
  %v1160 = vpack.c.b16 %v901, %v900
  %v1161 = vpack.c.b16 %v903, %v902
  %v1162 = vpack.c.b16 %v905, %v904
  %v1163 = vpack.c.b16 %v907, %v906
  %v1164 = vpack.c.b16 %v909, %v908
  %v1165 = vpack.c.b16 %v911, %v910
  %v1166 = vpack.c.b16 %v913, %v912
  %v1167 = vpack.c.b16 %v915, %v914
  %v1168 = vpack.c.b16 %v917, %v916
  %v1169 = vpack.c.b16 %v919, %v918
  %v1170 = vpack.c.b16 %v921, %v920
  %v1171 = vpack.c.b16 %v923, %v922
  %v1172 = vpack.c.b16 %v925, %v924
  %v1173 = vpack.c.b16 %v927, %v926
  %v1174 = vpack.c.b16 %v929, %v928
  %v1175 = vpack.c.b16 %v931, %v930
  %v1176 = vpack.c.b16 %v933, %v932
  %v1177 = vpack.c.b16 %v935, %v934
  %v1178 = vpack.c.b16 %v937, %v936
  %v1179 = vpack.c.b16 %v939, %v938
  %v1180 = vpack.c.b16 %v941, %v940
  %v1181 = vpack.c.b16 %v943, %v942
  %v1182 = vpack.c.b16 %v945, %v944
  %v1183 = vpack.c.b16 %v947, %v946
  %v1184 = vpack.c.b16 %v949, %v948
  %v1185 = vpack.c.b16 %v951, %v950
  %v1186 = vpack.c.b16 %v953, %v952
  %v1187 = vpack.c.b16 %v955, %v954
  %v1188 = vpack.c.b16 %v957, %v956
  %v1189 = vpack.c.b16 %v959, %v958
  %v1190 = vpack.c.b16 %v961, %v960
  %v1191 = vpack.c.b16 %v963, %v962
  %v1192 = vpack.c.b16 %v965, %v964
  %v1193 = vpack.c.b16 %v967, %v966
  %v1194 = vpack.c.b16 %v969, %v968
  %v1195 = vpack.c.b16 %v971, %v970
  %v1196 = vpack.c.b16 %v973, %v972
  %v1197 = vpack.c.b16 %v975, %v974
  %v1198 = vpack.c.b16 %v977, %v976
  %v1199 = vpack.c.b16 %v979, %v978
  %v1200 = vpack.c.b16 %v981, %v980
  %v1201 = vpack.c.b16 %v983, %v982
  %v1202 = vpack.c.b16 %v985, %v984
  %v1203 = vpack.c.b16 %v987, %v986
  %v1204 = vpack.c.b16 %v989, %v988
  %v1205 = vpack.c.b16 %v991, %v990
  %v1206 = vpack.c.b16 %v993, %v992
  %v1207 = vpack.c.b16 %v995, %v994
  %v1208 = vpack.c.b16 %v997, %v996
  %v1209 = vpack.c.b16 %v999, %v998
  %v1210 = vpack.c.b16 %v1001, %v1000
  %v1211 = vpack.c.b16 %v1003, %v1002
  %v1212 = vpack.c.b16 %v1005, %v1004
  %v1213 = vpack.c.b16 %v1007, %v1006
  %v1214 = vpack.c.b16 %v1009, %v1008
  %v1215 = vpack.c.b16 %v1011, %v1010
  %v1216 = vpack.c.b16 %v1013, %v1012
  %v1217 = vpack.c.b16 %v1015, %v1014
  %v1218 = vpack.c.b16 %v1017, %v1016
  %v1219 = vpack.c.b16 %v1019, %v1018
  %v1220 = vpack.c.b16 %v1021, %v1020
  %v1221 = vpack.c.b16 %v1023, %v1022
  %v1222 = vpack.c.b16 %v1025, %v1024
  %v1223 = vpack.c.b16 %v1027, %v1026
  %v1224 = vpack.c.b16 %v1029, %v1028
  %v1225 = vpack.c.b16 %v1031, %v1030
  %v1226 = vpack.c.b16 %v1033, %v1032
  %v1227 = vpack.c.b16 %v1035, %v1034
  %v1228 = vpack.c.b16 %v1037, %v1036
  %v1229 = vpack.c.b16 %v1039, %v1038
  %v1230 = vpack.c.b16 %v1041, %v1040
  %v1231 = vpack.c.b16 %v1043, %v1042
  %v1232 = vpack.c.b16 %v1045, %v1044
  %v1233 = vpack.c.b16 %v1047, %v1046
  %v1234 = vpack.c.b16 %v1049, %v1048
  %v1235 = vpack.c.b16 %v1051, %v1050
  %v1236 = vpack.c.b16 %v1053, %v1052
  %v1237 = vpack.c.b16 %v1055, %v1054
  %v1238 = vpack.c.b16 %v1057, %v1056
  %v1239 = vpack.c.b16 %v1059, %v1058
  %v1240 = vpack.c.b16 %v1061, %v1060
  %v1241 = vpack.c.b16 %v1063, %v1062
  %v1242 = vpack.c.b16 %v1065, %v1064
  %v1243 = vpack.c.b16 %v1067, %v1066
  %v1244 = vpack.c.b16 %v1069, %v1068
  %v1245 = vpack.c.b16 %v1071, %v1070
  %v1246 = vpack.c.b16 %v1073, %v1072
  %v1247 = vpack.c.b16 %v1075, %v1074
  %v1248 = vpack.c.b16 %v1077, %v1076
  %v1249 = vpack.c.b16 %v1079, %v1078
  %v1250 = vpack.c.b16 %v1081, %v1080
  %v1251 = vpack.c.b16 %v1083, %v1082
  %v1252 = vpack.c.b16 %v1085, %v1084
  %v1253 = vpack.c.b16 %v1087, %v1086
  %v1254 = vpack.c.b16 %v1089, %v1088
  %v1255 = vpack.c.b16 %v1091, %v1090
  %v1256 = vpack.c.b16 %v1093, %v1092
  %v1257 = vpack.c.b16 %v1095, %v1094
  %v1258 = vpack.c.b16 %v1097, %v1096
  %v1259 = vpack.c.b16 %v1099, %v1098
  %v1260 = vpack.c.b16 %v1101, %v1100
  %v1261 = vpack.c.b16 %v1103, %v1102
  %v1262 = vpack.c.b16 %v1105, %v1104
  %v1263 = vpack.c.b16 %v1106, %v1106
  %vm1420 = vcmask 556032
  %v1422 = vsel %vm1420, %v167, 0
  %vm1424 = vcmask 1041408
  %v1426 = vsel %vm1424, %v1263, 0
  %1428 = vmatprep.subr.bf16.mxu0 0
  %1429 = vmatpush1.bf16.msra.mxu0 %v1107
  %1430 = vmatprep.subr.bf16.mxu0 0
  %1431 = vmatpush1.bf16.msra.mxu0 %v1108
  %1432 = vmatprep.subr.bf16.mxu0 0
  %1433 = vmatpush1.bf16.msra.mxu0 %v1109
  %1434 = vmatprep.subr.bf16.mxu0 0
  %1435 = vmatpush1.bf16.msra.mxu0 %v1110
  %1436 = vmatprep.subr.bf16.mxu0 0
  %1437 = vmatpush1.bf16.msra.mxu0 %v1111
  %1438 = vmatprep.subr.bf16.mxu0 0
  %1439 = vmatpush1.bf16.msra.mxu0 %v1112
  %1440 = vmatprep.subr.bf16.mxu0 0
  %1441 = vmatpush1.bf16.msra.mxu0 %v1113
  %1442 = vmatprep.subr.bf16.mxu0 0
  %1443 = vmatpush1.bf16.msra.mxu0 %v1114
  %1444 = vmatprep.subr.bf16.mxu0 0
  %1445 = vmatpush1.bf16.msra.mxu0 %v1115
  %1446 = vmatprep.subr.bf16.mxu0 0
  %1447 = vmatpush1.bf16.msra.mxu0 %v1116
  %1448 = vmatprep.subr.bf16.mxu0 0
  %1449 = vmatpush1.bf16.msra.mxu0 %v1117
  %1450 = vmatprep.subr.bf16.mxu0 0
  %1451 = vmatpush1.bf16.msra.mxu0 %v1118
  %1452 = vmatprep.subr.bf16.mxu0 0
  %1453 = vmatpush1.bf16.msra.mxu0 %v1119
  %1454 = vmatprep.subr.bf16.mxu0 0
  %1455 = vmatpush1.bf16.msra.mxu0 %v1120
  %1456 = vmatprep.subr.bf16.mxu0 0
  %1457 = vmatpush1.bf16.msra.mxu0 %v1121
  %1458 = vmatprep.subr.bf16.mxu0 0
  %1459 = vmatpush1.bf16.msra.mxu0 %v1122
  %1460 = vmatprep.mubr.bf16.mxu0 %v149
  %1461 = vmatmul.mubr.bf16.gmra.mrb[0].mxu0 %v148
  %v1462 = vpop.f32.mrb[0].mxu0
  %v1463 = vadd.f32 0.0, %v1462
  %v1464 = vpop.f32.mrb[0].mxu0
  %v1465 = vpop.f32.mrb[0].mxu0
  %v1466 = vpop.f32.mrb[0].mxu0
  %1467 = vdwg.mxu0
  %1468 = vmatprep.subr.bf16.mxu0 0
  %1469 = vmatpush1.bf16.msra.mxu0 %v1123
  %1470 = vmatprep.subr.bf16.mxu0 0
  %1471 = vmatpush1.bf16.msra.mxu0 %v1124
  %1472 = vmatprep.subr.bf16.mxu0 0
  %1473 = vmatpush1.bf16.msra.mxu0 %v1125
  %1474 = vmatprep.subr.bf16.mxu0 0
  %1475 = vmatpush1.bf16.msra.mxu0 %v1126
  %1476 = vmatprep.subr.bf16.mxu0 0
  %1477 = vmatpush1.bf16.msra.mxu0 %v1127
  %1478 = vmatprep.subr.bf16.mxu0 0
  %1479 = vmatpush1.bf16.msra.mxu0 %v1128
  %1480 = vmatprep.subr.bf16.mxu0 0
  %1481 = vmatpush1.bf16.msra.mxu0 %v1129
  %1482 = vmatprep.subr.bf16.mxu0 0
  %1483 = vmatpush1.bf16.msra.mxu0 %v1130
  %1484 = vmatprep.subr.bf16.mxu0 0
  %1485 = vmatpush1.bf16.msra.mxu0 %v1131
  %1486 = vmatprep.subr.bf16.mxu0 0
  %1487 = vmatpush1.bf16.msra.mxu0 %v1132
  %1488 = vmatprep.subr.bf16.mxu0 0
  %1489 = vmatpush1.bf16.msra.mxu0 %v1133
  %1490 = vmatprep.subr.bf16.mxu0 0
  %1491 = vmatpush1.bf16.msra.mxu0 %v1134
  %1492 = vmatprep.subr.bf16.mxu0 0
  %1493 = vmatpush1.bf16.msra.mxu0 %v1135
  %1494 = vmatprep.subr.bf16.mxu0 0
  %1495 = vmatpush1.bf16.msra.mxu0 %v1136
  %1496 = vmatprep.subr.bf16.mxu0 0
  %1497 = vmatpush1.bf16.msra.mxu0 %v1137
  %1498 = vmatprep.subr.bf16.mxu0 0
  %1499 = vmatpush1.bf16.msra.mxu0 %v1138
  %1500 = vmatprep.mubr.bf16.mxu0 %v151
  %1501 = vmatmul.mubr.bf16.gmra.mrb[0].mxu0 %v150
  %v1502 = vpop.f32.mrb[0].mxu0
  %v1503 = vadd.f32 %v1463, %v1502
  %v1504 = vpop.f32.mrb[0].mxu0
  %v1505 = vpop.f32.mrb[0].mxu0
  %v1506 = vpop.f32.mrb[0].mxu0
  %1507 = vdwg.mxu0
  %1508 = vmatprep.subr.bf16.mxu0 0
  %1509 = vmatpush1.bf16.msra.mxu0 %v1139
  %1510 = vmatprep.subr.bf16.mxu0 0
  %1511 = vmatpush1.bf16.msra.mxu0 %v1140
  %1512 = vmatprep.subr.bf16.mxu0 0
  %1513 = vmatpush1.bf16.msra.mxu0 %v1141
  %1514 = vmatprep.subr.bf16.mxu0 0
  %1515 = vmatpush1.bf16.msra.mxu0 %v1142
  %1516 = vmatprep.subr.bf16.mxu0 0
  %1517 = vmatpush1.bf16.msra.mxu0 %v1143
  %1518 = vmatprep.subr.bf16.mxu0 0
  %1519 = vmatpush1.bf16.msra.mxu0 %v1144
  %1520 = vmatprep.subr.bf16.mxu0 0
  %1521 = vmatpush1.bf16.msra.mxu0 %v1145
  %1522 = vmatprep.subr.bf16.mxu0 0
  %1523 = vmatpush1.bf16.msra.mxu0 %v1146
  %1524 = vmatprep.subr.bf16.mxu0 0
  %1525 = vmatpush1.bf16.msra.mxu0 %v1147
  %1526 = vmatprep.subr.bf16.mxu0 0
  %1527 = vmatpush1.bf16.msra.mxu0 %v1148
  %1528 = vmatprep.subr.bf16.mxu0 0
  %1529 = vmatpush1.bf16.msra.mxu0 %v1149
  %1530 = vmatprep.subr.bf16.mxu0 0
  %1531 = vmatpush1.bf16.msra.mxu0 %v1150
  %1532 = vmatprep.subr.bf16.mxu0 0
  %1533 = vmatpush1.bf16.msra.mxu0 %v1151
  %1534 = vmatprep.subr.bf16.mxu0 0
  %1535 = vmatpush1.bf16.msra.mxu0 %v1152
  %1536 = vmatprep.subr.bf16.mxu0 0
  %1537 = vmatpush1.bf16.msra.mxu0 %v1153
  %1538 = vmatprep.subr.bf16.mxu0 0
  %1539 = vmatpush1.bf16.msra.mxu0 %v1154
  %1540 = vmatprep.mubr.bf16.mxu0 %v153
  %1541 = vmatmul.mubr.bf16.gmra.mrb[0].mxu0 %v152
  %v1542 = vpop.f32.mrb[0].mxu0
  %v1543 = vadd.f32 %v1503, %v1542
  %v1544 = vpop.f32.mrb[0].mxu0
  %v1545 = vpop.f32.mrb[0].mxu0
  %v1546 = vpop.f32.mrb[0].mxu0
  %1547 = vdwg.mxu0
  %1548 = vmatprep.subr.bf16.mxu0 0
  %1549 = vmatpush1.bf16.msra.mxu0 %v1155
  %1550 = vmatprep.subr.bf16.mxu0 0
  %1551 = vmatpush1.bf16.msra.mxu0 %v1156
  %1552 = vmatprep.subr.bf16.mxu0 0
  %1553 = vmatpush1.bf16.msra.mxu0 %v1157
  %1554 = vmatprep.subr.bf16.mxu0 0
  %1555 = vmatpush1.bf16.msra.mxu0 %v1158
  %1556 = vmatprep.subr.bf16.mxu0 0
  %1557 = vmatpush1.bf16.msra.mxu0 %v1159
  %1558 = vmatprep.subr.bf16.mxu0 0
  %1559 = vmatpush1.bf16.msra.mxu0 %v1160
  %1560 = vmatprep.subr.bf16.mxu0 0
  %1561 = vmatpush1.bf16.msra.mxu0 %v1161
  %1562 = vmatprep.subr.bf16.mxu0 0
  %1563 = vmatpush1.bf16.msra.mxu0 %v1162
  %1564 = vmatprep.subr.bf16.mxu0 0
  %1565 = vmatpush1.bf16.msra.mxu0 %v1163
  %1566 = vmatprep.subr.bf16.mxu0 0
  %1567 = vmatpush1.bf16.msra.mxu0 %v1164
  %1568 = vmatprep.subr.bf16.mxu0 0
  %1569 = vmatpush1.bf16.msra.mxu0 %v1165
  %1570 = vmatprep.subr.bf16.mxu0 0
  %1571 = vmatpush1.bf16.msra.mxu0 %v1166
  %1572 = vmatprep.subr.bf16.mxu0 0
  %1573 = vmatpush1.bf16.msra.mxu0 %v1167
  %1574 = vmatprep.subr.bf16.mxu0 0
  %1575 = vmatpush1.bf16.msra.mxu0 %v1168
  %1576 = vmatprep.subr.bf16.mxu0 0
  %1577 = vmatpush1.bf16.msra.mxu0 %v1169
  %1578 = vmatprep.subr.bf16.mxu0 0
  %1579 = vmatpush1.bf16.msra.mxu0 %v1170
  %1580 = vmatprep.mubr.bf16.mxu0 %v155
  %1581 = vmatmul.mubr.bf16.gmra.mrb[0].mxu0 %v154
  %v1582 = vpop.f32.mrb[0].mxu0
  %v1583 = vadd.f32 %v1543, %v1582
  %v1584 = vpop.f32.mrb[0].mxu0
  %v1585 = vpop.f32.mrb[0].mxu0
  %v1586 = vpop.f32.mrb[0].mxu0
  %1587 = vdwg.mxu0
  %1588 = vmatprep.subr.bf16.mxu0 0
  %1589 = vmatpush1.bf16.msra.mxu0 %v1171
  %1590 = vmatprep.subr.bf16.mxu0 0
  %1591 = vmatpush1.bf16.msra.mxu0 %v1172
  %1592 = vmatprep.subr.bf16.mxu0 0
  %1593 = vmatpush1.bf16.msra.mxu0 %v1173
  %1594 = vmatprep.subr.bf16.mxu0 0
  %1595 = vmatpush1.bf16.msra.mxu0 %v1174
  %1596 = vmatprep.subr.bf16.mxu0 0
  %1597 = vmatpush1.bf16.msra.mxu0 %v1175
  %1598 = vmatprep.subr.bf16.mxu0 0
  %1599 = vmatpush1.bf16.msra.mxu0 %v1176
  %1600 = vmatprep.subr.bf16.mxu0 0
  %1601 = vmatpush1.bf16.msra.mxu0 %v1177
  %1602 = vmatprep.subr.bf16.mxu0 0
  %1603 = vmatpush1.bf16.msra.mxu0 %v1178
  %1604 = vmatprep.subr.bf16.mxu0 0
  %1605 = vmatpush1.bf16.msra.mxu0 %v1179
  %1606 = vmatprep.subr.bf16.mxu0 0
  %1607 = vmatpush1.bf16.msra.mxu0 %v1180
  %1608 = vmatprep.subr.bf16.mxu0 0
  %1609 = vmatpush1.bf16.msra.mxu0 %v1181
  %1610 = vmatprep.subr.bf16.mxu0 0
  %1611 = vmatpush1.bf16.msra.mxu0 %v1182
  %1612 = vmatprep.subr.bf16.mxu0 0
  %1613 = vmatpush1.bf16.msra.mxu0 %v1183
  %1614 = vmatprep.subr.bf16.mxu0 0
  %1615 = vmatpush1.bf16.msra.mxu0 %v1184
  %1616 = vmatprep.subr.bf16.mxu0 0
  %1617 = vmatpush1.bf16.msra.mxu0 %v1185
  %1618 = vmatprep.subr.bf16.mxu0 0
  %1619 = vmatpush1.bf16.msra.mxu0 %v1186
  %1620 = vmatprep.mubr.bf16.mxu0 %v157
  %1621 = vmatmul.mubr.bf16.gmra.mrb[0].mxu0 %v156
  %v1622 = vpop.f32.mrb[0].mxu0
  %v1623 = vadd.f32 %v1583, %v1622
  %v1624 = vpop.f32.mrb[0].mxu0
  %v1625 = vpop.f32.mrb[0].mxu0
  %v1626 = vpop.f32.mrb[0].mxu0
  %1627 = vdwg.mxu0
  %1628 = vmatprep.subr.bf16.mxu0 0
  %1629 = vmatpush1.bf16.msra.mxu0 %v1187
  %1630 = vmatprep.subr.bf16.mxu0 0
  %1631 = vmatpush1.bf16.msra.mxu0 %v1188
  %1632 = vmatprep.subr.bf16.mxu0 0
  %1633 = vmatpush1.bf16.msra.mxu0 %v1189
  %1634 = vmatprep.subr.bf16.mxu0 0
  %1635 = vmatpush1.bf16.msra.mxu0 %v1190
  %1636 = vmatprep.subr.bf16.mxu0 0
  %1637 = vmatpush1.bf16.msra.mxu0 %v1191
  %1638 = vmatprep.subr.bf16.mxu0 0
  %1639 = vmatpush1.bf16.msra.mxu0 %v1192
  %1640 = vmatprep.subr.bf16.mxu0 0
  %1641 = vmatpush1.bf16.msra.mxu0 %v1193
  %1642 = vmatprep.subr.bf16.mxu0 0
  %1643 = vmatpush1.bf16.msra.mxu0 %v1194
  %1644 = vmatprep.subr.bf16.mxu0 0
  %1645 = vmatpush1.bf16.msra.mxu0 %v1195
  %1646 = vmatprep.subr.bf16.mxu0 0
  %1647 = vmatpush1.bf16.msra.mxu0 %v1196
  %1648 = vmatprep.subr.bf16.mxu0 0
  %1649 = vmatpush1.bf16.msra.mxu0 %v1197
  %1650 = vmatprep.subr.bf16.mxu0 0
  %1651 = vmatpush1.bf16.msra.mxu0 %v1198
  %1652 = vmatprep.subr.bf16.mxu0 0
  %1653 = vmatpush1.bf16.msra.mxu0 %v1199
  %1654 = vmatprep.subr.bf16.mxu0 0
  %1655 = vmatpush1.bf16.msra.mxu0 %v1200
  %1656 = vmatprep.subr.bf16.mxu0 0
  %1657 = vmatpush1.bf16.msra.mxu0 %v1201
  %1658 = vmatprep.subr.bf16.mxu0 0
  %1659 = vmatpush1.bf16.msra.mxu0 %v1202
  %1660 = vmatprep.mubr.bf16.mxu0 %v159
  %1661 = vmatmul.mubr.bf16.gmra.mrb[0].mxu0 %v158
  %v1662 = vpop.f32.mrb[0].mxu0
  %v1663 = vadd.f32 %v1623, %v1662
  %v1664 = vpop.f32.mrb[0].mxu0
  %v1665 = vpop.f32.mrb[0].mxu0
  %v1666 = vpop.f32.mrb[0].mxu0
  %1667 = vdwg.mxu0
  %1668 = vmatprep.subr.bf16.mxu0 0
  %1669 = vmatpush1.bf16.msra.mxu0 %v1203
  %1670 = vmatprep.subr.bf16.mxu0 0
  %1671 = vmatpush1.bf16.msra.mxu0 %v1204
  %1672 = vmatprep.subr.bf16.mxu0 0
  %1673 = vmatpush1.bf16.msra.mxu0 %v1205
  %1674 = vmatprep.subr.bf16.mxu0 0
  %1675 = vmatpush1.bf16.msra.mxu0 %v1206
  %1676 = vmatprep.subr.bf16.mxu0 0
  %1677 = vmatpush1.bf16.msra.mxu0 %v1207
  %1678 = vmatprep.subr.bf16.mxu0 0
  %1679 = vmatpush1.bf16.msra.mxu0 %v1208
  %1680 = vmatprep.subr.bf16.mxu0 0
  %1681 = vmatpush1.bf16.msra.mxu0 %v1209
  %1682 = vmatprep.subr.bf16.mxu0 0
  %1683 = vmatpush1.bf16.msra.mxu0 %v1210
  %1684 = vmatprep.subr.bf16.mxu0 0
  %1685 = vmatpush1.bf16.msra.mxu0 %v1211
  %1686 = vmatprep.subr.bf16.mxu0 0
  %1687 = vmatpush1.bf16.msra.mxu0 %v1212
  %1688 = vmatprep.subr.bf16.mxu0 0
  %1689 = vmatpush1.bf16.msra.mxu0 %v1213
  %1690 = vmatprep.subr.bf16.mxu0 0
  %1691 = vmatpush1.bf16.msra.mxu0 %v1214
  %1692 = vmatprep.subr.bf16.mxu0 0
  %1693 = vmatpush1.bf16.msra.mxu0 %v1215
  %1694 = vmatprep.subr.bf16.mxu0 0
  %1695 = vmatpush1.bf16.msra.mxu0 %v1216
  %1696 = vmatprep.subr.bf16.mxu0 0
  %1697 = vmatpush1.bf16.msra.mxu0 %v1217
  %1698 = vmatprep.subr.bf16.mxu0 0
  %1699 = vmatpush1.bf16.msra.mxu0 %v1218
  %1700 = vmatprep.mubr.bf16.mxu0 %v161
  %1701 = vmatmul.mubr.bf16.gmra.mrb[0].mxu0 %v160
  %v1702 = vpop.f32.mrb[0].mxu0
  %v1703 = vadd.f32 %v1663, %v1702
  %v1704 = vpop.f32.mrb[0].mxu0
  %v1705 = vpop.f32.mrb[0].mxu0
  %v1706 = vpop.f32.mrb[0].mxu0
  %1707 = vdwg.mxu0
  %1708 = vmatprep.subr.bf16.mxu0 0
  %1709 = vmatpush1.bf16.msra.mxu0 %v1219
  %1710 = vmatprep.subr.bf16.mxu0 0
  %1711 = vmatpush1.bf16.msra.mxu0 %v1220
  %1712 = vmatprep.subr.bf16.mxu0 0
  %1713 = vmatpush1.bf16.msra.mxu0 %v1221
  %1714 = vmatprep.subr.bf16.mxu0 0
  %1715 = vmatpush1.bf16.msra.mxu0 %v1222
  %1716 = vmatprep.subr.bf16.mxu0 0
  %1717 = vmatpush1.bf16.msra.mxu0 %v1223
  %1718 = vmatprep.subr.bf16.mxu0 0
  %1719 = vmatpush1.bf16.msra.mxu0 %v1224
  %1720 = vmatprep.subr.bf16.mxu0 0
  %1721 = vmatpush1.bf16.msra.mxu0 %v1225
  %1722 = vmatprep.subr.bf16.mxu0 0
  %1723 = vmatpush1.bf16.msra.mxu0 %v1226
  %1724 = vmatprep.subr.bf16.mxu0 0
  %1725 = vmatpush1.bf16.msra.mxu0 %v1227
  %1726 = vmatprep.subr.bf16.mxu0 0
  %1727 = vmatpush1.bf16.msra.mxu0 %v1228
  %1728 = vmatprep.subr.bf16.mxu0 0
  %1729 = vmatpush1.bf16.msra.mxu0 %v1229
  %1730 = vmatprep.subr.bf16.mxu0 0
  %1731 = vmatpush1.bf16.msra.mxu0 %v1230
  %1732 = vmatprep.subr.bf16.mxu0 0
  %1733 = vmatpush1.bf16.msra.mxu0 %v1231
  %1734 = vmatprep.subr.bf16.mxu0 0
  %1735 = vmatpush1.bf16.msra.mxu0 %v1232
  %1736 = vmatprep.subr.bf16.mxu0 0
  %1737 = vmatpush1.bf16.msra.mxu0 %v1233
  %1738 = vmatprep.subr.bf16.mxu0 0
  %1739 = vmatpush1.bf16.msra.mxu0 %v1234
  %1740 = vmatprep.mubr.bf16.mxu0 %v163
  %1741 = vmatmul.mubr.bf16.gmra.mrb[0].mxu0 %v162
  %v1742 = vpop.f32.mrb[0].mxu0
  %v1743 = vadd.f32 %v1703, %v1742
  %v1744 = vpop.f32.mrb[0].mxu0
  %v1745 = vpop.f32.mrb[0].mxu0
  %v1746 = vpop.f32.mrb[0].mxu0
  %1747 = vdwg.mxu0
  %1748 = vmatprep.subr.bf16.mxu0 0
  %1749 = vmatpush1.bf16.msra.mxu0 %v1235
  %1750 = vmatprep.subr.bf16.mxu0 0
  %1751 = vmatpush1.bf16.msra.mxu0 %v1236
  %1752 = vmatprep.subr.bf16.mxu0 0
  %1753 = vmatpush1.bf16.msra.mxu0 %v1237
  %1754 = vmatprep.subr.bf16.mxu0 0
  %1755 = vmatpush1.bf16.msra.mxu0 %v1238
  %1756 = vmatprep.subr.bf16.mxu0 0
  %1757 = vmatpush1.bf16.msra.mxu0 %v1239
  %1758 = vmatprep.subr.bf16.mxu0 0
  %1759 = vmatpush1.bf16.msra.mxu0 %v1240
  %1760 = vmatprep.subr.bf16.mxu0 0
  %1761 = vmatpush1.bf16.msra.mxu0 %v1241
  %1762 = vmatprep.subr.bf16.mxu0 0
  %1763 = vmatpush1.bf16.msra.mxu0 %v1242
  %1764 = vmatprep.subr.bf16.mxu0 0
  %1765 = vmatpush1.bf16.msra.mxu0 %v1243
  %1766 = vmatprep.subr.bf16.mxu0 0
  %1767 = vmatpush1.bf16.msra.mxu0 %v1244
  %1768 = vmatprep.subr.bf16.mxu0 0
  %1769 = vmatpush1.bf16.msra.mxu0 %v1245
  %1770 = vmatprep.subr.bf16.mxu0 0
  %1771 = vmatpush1.bf16.msra.mxu0 %v1246
  %1772 = vmatprep.subr.bf16.mxu0 0
  %1773 = vmatpush1.bf16.msra.mxu0 %v1247
  %1774 = vmatprep.subr.bf16.mxu0 0
  %1775 = vmatpush1.bf16.msra.mxu0 %v1248
  %1776 = vmatprep.subr.bf16.mxu0 0
  %1777 = vmatpush1.bf16.msra.mxu0 %v1249
  %1778 = vmatprep.subr.bf16.mxu0 0
  %1779 = vmatpush1.bf16.msra.mxu0 %v1250
  %1780 = vmatprep.mubr.bf16.mxu0 %v165
  %1781 = vmatmul.mubr.bf16.gmra.mrb[0].mxu0 %v164
  %v1782 = vpop.f32.mrb[0].mxu0
  %v1783 = vadd.f32 %v1743, %v1782
  %v1784 = vpop.f32.mrb[0].mxu0
  %v1785 = vpop.f32.mrb[0].mxu0
  %v1786 = vpop.f32.mrb[0].mxu0
  %1787 = vdwg.mxu0
  %1788 = vmatprep.subr.bf16.mxu0 0
  %1789 = vmatpush1.bf16.msra.mxu0 %v1251
  %1790 = vmatprep.subr.bf16.mxu0 0
  %1791 = vmatpush1.bf16.msra.mxu0 %v1252
  %1792 = vmatprep.subr.bf16.mxu0 0
  %1793 = vmatpush1.bf16.msra.mxu0 %v1253
  %1794 = vmatprep.subr.bf16.mxu0 0
  %1795 = vmatpush1.bf16.msra.mxu0 %v1254
  %1796 = vmatprep.subr.bf16.mxu0 0
  %1797 = vmatpush1.bf16.msra.mxu0 %v1255
  %1798 = vmatprep.subr.bf16.mxu0 0
  %1799 = vmatpush1.bf16.msra.mxu0 %v1256
  %1800 = vmatprep.subr.bf16.mxu0 0
  %1801 = vmatpush1.bf16.msra.mxu0 %v1257
  %1802 = vmatprep.subr.bf16.mxu0 0
  %1803 = vmatpush1.bf16.msra.mxu0 %v1258
  %1804 = vmatprep.subr.bf16.mxu0 0
  %1805 = vmatpush1.bf16.msra.mxu0 %v1259
  %1806 = vmatprep.subr.bf16.mxu0 0
  %1807 = vmatpush1.bf16.msra.mxu0 %v1260
  %1808 = vmatprep.subr.bf16.mxu0 0
  %1809 = vmatpush1.bf16.msra.mxu0 %v1261
  %1810 = vmatprep.subr.bf16.mxu0 0
  %1811 = vmatpush1.bf16.msra.mxu0 %v1262
  %1812 = vmatprep.subr.bf16.mxu0 0
  %1813 = vmatpush1.bf16.msra.mxu0 %v1426
  %1814 = vmatprep.subr.bf16.mxu0 0
  %1815 = vmatpush1.bf16.msra.mxu0 0
  %1816 = vmatprep.subr.bf16.mxu0 0
  %1817 = vmatpush1.bf16.msra.mxu0 0
  %1818 = vmatprep.subr.bf16.mxu0 0
  %1819 = vmatpush1.bf16.msra.mxu0 0
  %1820 = vmatprep.mubr.bf16.mxu0 %v1422
  %1821 = vmatmul.mubr.bf16.gmra.mrb[0].mxu0 %v166
  %v1822 = vpop.f32.mrb[0].mxu0
  %v1823 = vadd.f32 %v1783, %v1822
  %v1824 = vpop.f32.mrb[0].mxu0
  %v1825 = vpop.f32.mrb[0].mxu0
  %v1826 = vpop.f32.mrb[0].mxu0
  %1827 = vdwg.mxu0
  %v1841 = vunpack.c.l.b16 %v32
  %v1842 = vunpack.c.l.b16 %v33
  %v1843 = vunpack.c.l.b16 %v34
  %v1844 = vunpack.c.l.b16 %v35
  %v1845 = vunpack.c.l.b16 %v36
  %v1846 = vunpack.c.l.b16 %v37
  %v1847 = vunpack.c.l.b16 %v38
  %v1848 = vunpack.c.l.b16 %v39
  %v1849 = vunpack.c.l.b16 %v40
  %v1850 = vunpack.c.l.b16 %v41
  %v1851 = vunpack.c.l.b16 %v42
  %v1852 = vunpack.c.l.b16 %v43
  %v1853 = vunpack.c.l.b16 %v44
  %v1854 = vpack.c.b16 %v1842, %v1841
  %v1855 = vpack.c.b16 %v1844, %v1843
  %v1856 = vpack.c.b16 %v1846, %v1845
  %v1857 = vpack.c.b16 %v1848, %v1847
  %v1858 = vpack.c.b16 %v1850, %v1849
  %v1859 = vpack.c.b16 %v1852, %v1851
  %v1860 = vpack.c.b16 %v1853, %v1853
  %vm1867 = vcmask 818176
  %v1869 = vsel %vm1867, %v31, 0
  %v1872 = vsel %vm1424, %v1860, 0
  %1874 = vmatprep.subr.bf16.mxu0 0
  %1875 = vmatpush1.bf16.msra.mxu0 %v1854
  %1876 = vmatprep.subr.bf16.mxu0 0
  %1877 = vmatpush1.bf16.msra.mxu0 %v1855
  %1878 = vmatprep.subr.bf16.mxu0 0
  %1879 = vmatpush1.bf16.msra.mxu0 %v1856
  %1880 = vmatprep.subr.bf16.mxu0 0
  %1881 = vmatpush1.bf16.msra.mxu0 %v1857
  %1882 = vmatprep.subr.bf16.mxu0 0
  %1883 = vmatpush1.bf16.msra.mxu0 %v1858
  %1884 = vmatprep.subr.bf16.mxu0 0
  %1885 = vmatpush1.bf16.msra.mxu0 %v1859
  %1886 = vmatprep.subr.bf16.mxu0 0
  %1887 = vmatpush1.bf16.msra.mxu0 %v1872
  %1888 = vmatprep.subr.bf16.mxu0 0
  %1889 = vmatpush1.bf16.msra.mxu0 0
  %1890 = vmatprep.subr.bf16.mxu0 0
  %1891 = vmatpush1.bf16.msra.mxu0 0
  %1892 = vmatprep.subr.bf16.mxu0 0
  %1893 = vmatpush1.bf16.msra.mxu0 0
  %1894 = vmatprep.subr.bf16.mxu0 0
  %1895 = vmatpush1.bf16.msra.mxu0 0
  %1896 = vmatprep.subr.bf16.mxu0 0
  %1897 = vmatpush1.bf16.msra.mxu0 0
  %1898 = vmatprep.subr.bf16.mxu0 0
  %1899 = vmatpush1.bf16.msra.mxu0 0
  %1900 = vmatprep.subr.bf16.mxu0 0
  %1901 = vmatpush1.bf16.msra.mxu0 0
  %1902 = vmatprep.subr.bf16.mxu0 0
  %1903 = vmatpush1.bf16.msra.mxu0 0
  %1904 = vmatprep.subr.bf16.mxu0 0
  %1905 = vmatpush1.bf16.msra.mxu0 0
  %1906 = vmatprep.mubr.bf16.mxu0 0
  %1907 = vmatmul.mubr.bf16.gmra.mrb[0].mxu0 %v1869
  %v1908 = vpop.f32.mrb[0].mxu0
  %v1909 = vadd.f32 %v1823, %v1908
  %v1910 = vpop.f32.mrb[0].mxu0
  %v1911 = vpop.f32.mrb[0].mxu0
  %v1912 = vpop.f32.mrb[0].mxu0
  %1913 = vdwg.mxu0
  %v1914 = vld [vmem:[%s4] sm:$0x1]
  %v1915 = vadd.f32 %v1909, %v1914
  %v1916 = vpack.c.bf16 %v1915, %v1915
  %v1917 = vld [vmem:[%s5] sm:$0xff]
  %v1918 = vld [vmem:[%s5 + $0x8] sm:$0xff]
  %v1919 = vld [vmem:[%s5 + $0x10] sm:$0xff]
  %v1920 = vld [vmem:[%s5 + $0x18] sm:$0xff]
  %v1921 = vld [vmem:[%s5 + $0x20] sm:$0xff]
  %v1922 = vld [vmem:[%s5 + $0x28] sm:$0xff]
  %v1923 = vld [vmem:[%s5 + $0x30] sm:$0xff]
  %v1924 = vld [vmem:[%s5 + $0x38] sm:$0xff]
  %v1925 = vld [vmem:[%s5 + $0x40] sm:$0xff]
  %v1926 = vld [vmem:[%s5 + $0x48] sm:$0xff]
  %v1927 = vld [vmem:[%s5 + $0x50] sm:$0xff]
  %v1928 = vld [vmem:[%s5 + $0x58] sm:$0xff]
  %v1929 = vld [vmem:[%s5 + $0x60] sm:$0xff]
  %v1930 = vld [vmem:[%s5 + $0x68] sm:$0xff]
  %v1931 = vld [vmem:[%s5 + $0x70] sm:$0xff]
  %v1932 = vld [vmem:[%s5 + $0x78] sm:$0xff]
  %v1933 = vld [vmem:[%s5 + $0x80] sm:$0xff]
  %v1934 = vld [vmem:[%s5 + $0x88] sm:$0xff]
  %v1935 = vld [vmem:[%s5 + $0x90] sm:$0xff]
  %v1936 = vld [vmem:[%s5 + $0x98] sm:$0xff]
  %v1937 = vld [vmem:[%s5 + $0xa0] sm:$0xff]
  %v1938 = vld [vmem:[%s5 + $0xa8] sm:$0xff]
  %v1939 = vld [vmem:[%s5 + $0xb0] sm:$0xff]
  %v1940 = vld [vmem:[%s5 + $0xb8] sm:$0xff]
  %v1941 = vld [vmem:[%s5 + $0xc0] sm:$0xff]
  %v1942 = vld [vmem:[%s5 + $0xc8] sm:$0xff]
  %v1943 = vld [vmem:[%s5 + $0xd0] sm:$0xff]
  %v1944 = vld [vmem:[%s5 + $0xd8] sm:$0xff]
  %v1945 = vld [vmem:[%s5 + $0xe0] sm:$0xff]
  %v1946 = vld [vmem:[%s5 + $0xe8] sm:$0xff]
  %v1947 = vld [vmem:[%s5 + $0xf0] sm:$0xff]
  %v1948 = vld [vmem:[%s5 + $0xf8] sm:$0xff]
  %v1949 = vld [vmem:[%s5 + $0x100] sm:$0xff]
  %v1950 = vld [vmem:[%s5 + $0x108] sm:$0xff]
  %v1951 = vld [vmem:[%s5 + $0x110] sm:$0xff]
  %v1952 = vld [vmem:[%s5 + $0x118] sm:$0xff]
  %v1953 = vld [vmem:[%s5 + $0x120] sm:$0xff]
  %v1954 = vld [vmem:[%s5 + $0x128] sm:$0xff]
  %v1955 = vld [vmem:[%s5 + $0x130] sm:$0xff]
  %v1956 = vld [vmem:[%s5 + $0x138] sm:$0xff]
  %v1957 = vld [vmem:[%s5 + $0x140] sm:$0xff]
  %v1958 = vld [vmem:[%s5 + $0x148] sm:$0xff]
  %v1959 = vld [vmem:[%s5 + $0x150] sm:$0xff]
  %v1960 = vld [vmem:[%s5 + $0x158] sm:$0xff]
  %v1961 = vld [vmem:[%s5 + $0x160] sm:$0xff]
  %v1962 = vld [vmem:[%s5 + $0x168] sm:$0xff]
  %v1963 = vld [vmem:[%s5 + $0x170] sm:$0xff]
  %v1964 = vld [vmem:[%s5 + $0x178] sm:$0xff]
  %v1965 = vld [vmem:[%s5 + $0x180] sm:$0xff]
  %v1966 = vld [vmem:[%s5 + $0x188] sm:$0xff]
  %v1967 = vld [vmem:[%s5 + $0x190] sm:$0xff]
  %v1968 = vld [vmem:[%s5 + $0x198] sm:$0xff]
  %v1969 = vld [vmem:[%s5 + $0x1a0] sm:$0xff]
  %v1970 = vld [vmem:[%s5 + $0x1a8] sm:$0xff]
  %v1971 = vld [vmem:[%s5 + $0x1b0] sm:$0xff]
  %v1972 = vld [vmem:[%s5 + $0x1b8] sm:$0xff]
  %v1973 = vld [vmem:[%s5 + $0x1c0] sm:$0xff]
  %v1974 = vld [vmem:[%s5 + $0x1c8] sm:$0xff]
  %v1975 = vld [vmem:[%s5 + $0x1d0] sm:$0xff]
  %v1976 = vld [vmem:[%s5 + $0x1d8] sm:$0xff]
  %v1977 = vld [vmem:[%s5 + $0x1e0] sm:$0xff]
  %v1978 = vld [vmem:[%s5 + $0x1e8] sm:$0xff]
  %v1979 = vld [vmem:[%s5 + $0x1f0] sm:$0xff]
  %v1980 = vld [vmem:[%s5 + $0x1f8] sm:$0xff]
  %v1981 = vld [vmem:[%s5 + $0x200] sm:$0xff]
  %v1982 = vld [vmem:[%s5 + $0x208] sm:$0xff]
  %v1983 = vld [vmem:[%s5 + $0x210] sm:$0xff]
  %v1984 = vld [vmem:[%s5 + $0x218] sm:$0xff]
  %v1985 = vld [vmem:[%s5 + $0x220] sm:$0xff]
  %v1986 = vld [vmem:[%s5 + $0x228] sm:$0xff]
  %v1987 = vld [vmem:[%s5 + $0x230] sm:$0xff]
  %v1988 = vld [vmem:[%s5 + $0x238] sm:$0xff]
  %v1989 = vld [vmem:[%s5 + $0x240] sm:$0xff]
  %v1990 = vld [vmem:[%s5 + $0x248] sm:$0xff]
  %v1991 = vld [vmem:[%s5 + $0x250] sm:$0xff]
  %v1992 = vld [vmem:[%s5 + $0x258] sm:$0xff]
  %v1993 = vld [vmem:[%s5 + $0x260] sm:$0xff]
  %v1994 = vld [vmem:[%s5 + $0x268] sm:$0xff]
  %v1995 = vld [vmem:[%s5 + $0x270] sm:$0xff]
  %v1996 = vld [vmem:[%s5 + $0x278] sm:$0xff]
  %v1997 = vld [vmem:[%s6] sm:$0xff]
  %v1998 = vld [vmem:[%s6 + $0x8] sm:$0xff]
  %v1999 = vld [vmem:[%s6 + $0x10] sm:$0xf]
  %v2080 = vunpack.c.l.b16 %v1917
  %v2081 = vunpack.c.h.b16 %v1917
  %v2082 = vunpack.c.l.b16 %v1918
  %v2083 = vunpack.c.h.b16 %v1918
  %v2084 = vunpack.c.l.b16 %v1919
  %v2085 = vunpack.c.h.b16 %v1919
  %v2086 = vunpack.c.l.b16 %v1920
  %v2087 = vunpack.c.h.b16 %v1920
  %v2088 = vunpack.c.l.b16 %v1921
  %v2089 = vunpack.c.h.b16 %v1921
  %v2090 = vunpack.c.l.b16 %v1922
  %v2091 = vunpack.c.h.b16 %v1922
  %v2092 = vunpack.c.l.b16 %v1923
  %v2093 = vunpack.c.h.b16 %v1923
  %v2094 = vunpack.c.l.b16 %v1924
  %v2095 = vunpack.c.h.b16 %v1924
  %v2096 = vunpack.c.l.b16 %v1925
  %v2097 = vunpack.c.h.b16 %v1925
  %v2098 = vunpack.c.l.b16 %v1926
  %v2099 = vunpack.c.h.b16 %v1926
  %v2100 = vunpack.c.l.b16 %v1927
  %v2101 = vunpack.c.h.b16 %v1927
  %v2102 = vunpack.c.l.b16 %v1928
  %v2103 = vunpack.c.h.b16 %v1928
  %v2104 = vunpack.c.l.b16 %v1929
  %v2105 = vunpack.c.h.b16 %v1929
  %v2106 = vunpack.c.l.b16 %v1930
  %v2107 = vunpack.c.h.b16 %v1930
  %v2108 = vunpack.c.l.b16 %v1931
  %v2109 = vunpack.c.h.b16 %v1931
  %v2110 = vunpack.c.l.b16 %v1932
  %v2111 = vunpack.c.h.b16 %v1932
  %v2112 = vunpack.c.l.b16 %v1933
  %v2113 = vunpack.c.h.b16 %v1933
  %v2114 = vunpack.c.l.b16 %v1934
  %v2115 = vunpack.c.h.b16 %v1934
  %v2116 = vunpack.c.l.b16 %v1935
  %v2117 = vunpack.c.h.b16 %v1935
  %v2118 = vunpack.c.l.b16 %v1936
  %v2119 = vunpack.c.h.b16 %v1936
  %v2120 = vunpack.c.l.b16 %v1937
  %v2121 = vunpack.c.h.b16 %v1937
  %v2122 = vunpack.c.l.b16 %v1938
  %v2123 = vunpack.c.h.b16 %v1938
  %v2124 = vunpack.c.l.b16 %v1939
  %v2125 = vunpack.c.h.b16 %v1939
  %v2126 = vunpack.c.l.b16 %v1940
  %v2127 = vunpack.c.h.b16 %v1940
  %v2128 = vunpack.c.l.b16 %v1941
  %v2129 = vunpack.c.h.b16 %v1941
  %v2130 = vunpack.c.l.b16 %v1942
  %v2131 = vunpack.c.h.b16 %v1942
  %v2132 = vunpack.c.l.b16 %v1943
  %v2133 = vunpack.c.h.b16 %v1943
  %v2134 = vunpack.c.l.b16 %v1944
  %v2135 = vunpack.c.h.b16 %v1944
  %v2136 = vunpack.c.l.b16 %v1945
  %v2137 = vunpack.c.h.b16 %v1945
  %v2138 = vunpack.c.l.b16 %v1946
  %v2139 = vunpack.c.h.b16 %v1946
  %v2140 = vunpack.c.l.b16 %v1947
  %v2141 = vunpack.c.h.b16 %v1947
  %v2142 = vunpack.c.l.b16 %v1948
  %v2143 = vunpack.c.h.b16 %v1948
  %v2144 = vunpack.c.l.b16 %v1949
  %v2145 = vunpack.c.h.b16 %v1949
  %v2146 = vunpack.c.l.b16 %v1950
  %v2147 = vunpack.c.h.b16 %v1950
  %v2148 = vunpack.c.l.b16 %v1951
  %v2149 = vunpack.c.h.b16 %v1951
  %v2150 = vunpack.c.l.b16 %v1952
  %v2151 = vunpack.c.h.b16 %v1952
  %v2152 = vunpack.c.l.b16 %v1953
  %v2153 = vunpack.c.h.b16 %v1953
  %v2154 = vunpack.c.l.b16 %v1954
  %v2155 = vunpack.c.h.b16 %v1954
  %v2156 = vunpack.c.l.b16 %v1955
  %v2157 = vunpack.c.h.b16 %v1955
  %v2158 = vunpack.c.l.b16 %v1956
  %v2159 = vunpack.c.h.b16 %v1956
  %v2160 = vunpack.c.l.b16 %v1957
  %v2161 = vunpack.c.h.b16 %v1957
  %v2162 = vunpack.c.l.b16 %v1958
  %v2163 = vunpack.c.h.b16 %v1958
  %v2164 = vunpack.c.l.b16 %v1959
  %v2165 = vunpack.c.h.b16 %v1959
  %v2166 = vunpack.c.l.b16 %v1960
  %v2167 = vunpack.c.h.b16 %v1960
  %v2168 = vunpack.c.l.b16 %v1961
  %v2169 = vunpack.c.h.b16 %v1961
  %v2170 = vunpack.c.l.b16 %v1962
  %v2171 = vunpack.c.h.b16 %v1962
  %v2172 = vunpack.c.l.b16 %v1963
  %v2173 = vunpack.c.h.b16 %v1963
  %v2174 = vunpack.c.l.b16 %v1964
  %v2175 = vunpack.c.h.b16 %v1964
  %v2176 = vunpack.c.l.b16 %v1965
  %v2177 = vunpack.c.h.b16 %v1965
  %v2178 = vunpack.c.l.b16 %v1966
  %v2179 = vunpack.c.h.b16 %v1966
  %v2180 = vunpack.c.l.b16 %v1967
  %v2181 = vunpack.c.h.b16 %v1967
  %v2182 = vunpack.c.l.b16 %v1968
  %v2183 = vunpack.c.h.b16 %v1968
  %v2184 = vunpack.c.l.b16 %v1969
  %v2185 = vunpack.c.h.b16 %v1969
  %v2186 = vunpack.c.l.b16 %v1970
  %v2187 = vunpack.c.h.b16 %v1970
  %v2188 = vunpack.c.l.b16 %v1971
  %v2189 = vunpack.c.h.b16 %v1971
  %v2190 = vunpack.c.l.b16 %v1972
  %v2191 = vunpack.c.h.b16 %v1972
  %v2192 = vunpack.c.l.b16 %v1973
  %v2193 = vunpack.c.h.b16 %v1973
  %v2194 = vunpack.c.l.b16 %v1974
  %v2195 = vunpack.c.h.b16 %v1974
  %v2196 = vunpack.c.l.b16 %v1975
  %v2197 = vunpack.c.h.b16 %v1975
  %v2198 = vunpack.c.l.b16 %v1976
  %v2199 = vunpack.c.h.b16 %v1976
  %v2200 = vunpack.c.l.b16 %v1977
  %v2201 = vunpack.c.h.b16 %v1977
  %v2202 = vunpack.c.l.b16 %v1978
  %v2203 = vunpack.c.h.b16 %v1978
  %v2204 = vunpack.c.l.b16 %v1979
  %v2205 = vunpack.c.h.b16 %v1979
  %v2206 = vunpack.c.l.b16 %v1980
  %v2207 = vunpack.c.h.b16 %v1980
  %v2208 = vunpack.c.l.b16 %v1981
  %v2209 = vunpack.c.h.b16 %v1981
  %v2210 = vunpack.c.l.b16 %v1982
  %v2211 = vunpack.c.h.b16 %v1982
  %v2212 = vunpack.c.l.b16 %v1983
  %v2213 = vunpack.c.h.b16 %v1983
  %v2214 = vunpack.c.l.b16 %v1984
  %v2215 = vunpack.c.h.b16 %v1984
  %v2216 = vunpack.c.l.b16 %v1985
  %v2217 = vunpack.c.h.b16 %v1985
  %v2218 = vunpack.c.l.b16 %v1986
  %v2219 = vunpack.c.h.b16 %v1986
  %v2220 = vunpack.c.l.b16 %v1987
  %v2221 = vunpack.c.h.b16 %v1987
  %v2222 = vunpack.c.l.b16 %v1988
  %v2223 = vunpack.c.h.b16 %v1988
  %v2224 = vunpack.c.l.b16 %v1989
  %v2225 = vunpack.c.h.b16 %v1989
  %v2226 = vunpack.c.l.b16 %v1990
  %v2227 = vunpack.c.h.b16 %v1990
  %v2228 = vunpack.c.l.b16 %v1991
  %v2229 = vunpack.c.h.b16 %v1991
  %v2230 = vunpack.c.l.b16 %v1992
  %v2231 = vunpack.c.h.b16 %v1992
  %v2232 = vunpack.c.l.b16 %v1993
  %v2233 = vunpack.c.h.b16 %v1993
  %v2234 = vunpack.c.l.b16 %v1994
  %v2235 = vunpack.c.h.b16 %v1994
  %v2236 = vunpack.c.l.b16 %v1995
  %v2237 = vunpack.c.h.b16 %v1995
  %v2238 = vunpack.c.l.b16 %v1996
  %v2239 = vunpack.c.h.b16 %v1996
  %v2240 = vpack.c.b16 %v2100, %v2080
  %v2241 = vpack.c.b16 %v2101, %v2081
  %v2242 = vpack.c.b16 %v2102, %v2082
  %v2243 = vpack.c.b16 %v2103, %v2083
  %v2244 = vpack.c.b16 %v2104, %v2084
  %v2245 = vpack.c.b16 %v2105, %v2085
  %v2246 = vpack.c.b16 %v2106, %v2086
  %v2247 = vpack.c.b16 %v2107, %v2087
  %v2248 = vpack.c.b16 %v2108, %v2088
  %v2249 = vpack.c.b16 %v2109, %v2089
  %v2250 = vpack.c.b16 %v2110, %v2090
  %v2251 = vpack.c.b16 %v2111, %v2091
  %v2252 = vpack.c.b16 %v2112, %v2092
  %v2253 = vpack.c.b16 %v2113, %v2093
  %v2254 = vpack.c.b16 %v2114, %v2094
  %v2255 = vpack.c.b16 %v2115, %v2095
  %v2256 = vpack.c.b16 %v2116, %v2096
  %v2257 = vpack.c.b16 %v2117, %v2097
  %v2258 = vpack.c.b16 %v2118, %v2098
  %v2259 = vpack.c.b16 %v2119, %v2099
  %v2260 = vpack.c.b16 %v2140, %v2120
  %v2261 = vpack.c.b16 %v2141, %v2121
  %v2262 = vpack.c.b16 %v2142, %v2122
  %v2263 = vpack.c.b16 %v2143, %v2123
  %v2264 = vpack.c.b16 %v2144, %v2124
  %v2265 = vpack.c.b16 %v2145, %v2125
  %v2266 = vpack.c.b16 %v2146, %v2126
  %v2267 = vpack.c.b16 %v2147, %v2127
  %v2268 = vpack.c.b16 %v2148, %v2128
  %v2269 = vpack.c.b16 %v2149, %v2129
  %v2270 = vpack.c.b16 %v2150, %v2130
  %v2271 = vpack.c.b16 %v2151, %v2131
  %v2272 = vpack.c.b16 %v2152, %v2132
  %v2273 = vpack.c.b16 %v2153, %v2133
  %v2274 = vpack.c.b16 %v2154, %v2134
  %v2275 = vpack.c.b16 %v2155, %v2135
  %v2276 = vpack.c.b16 %v2156, %v2136
  %v2277 = vpack.c.b16 %v2157, %v2137
  %v2278 = vpack.c.b16 %v2158, %v2138
  %v2279 = vpack.c.b16 %v2159, %v2139
  %v2280 = vpack.c.b16 %v2180, %v2160
  %v2281 = vpack.c.b16 %v2181, %v2161
  %v2282 = vpack.c.b16 %v2182, %v2162
  %v2283 = vpack.c.b16 %v2183, %v2163
  %v2284 = vpack.c.b16 %v2184, %v2164
  %v2285 = vpack.c.b16 %v2185, %v2165
  %v2286 = vpack.c.b16 %v2186, %v2166
  %v2287 = vpack.c.b16 %v2187, %v2167
  %v2288 = vpack.c.b16 %v2188, %v2168
  %v2289 = vpack.c.b16 %v2189, %v2169
  %v2290 = vpack.c.b16 %v2190, %v2170
  %v2291 = vpack.c.b16 %v2191, %v2171
  %v2292 = vpack.c.b16 %v2192, %v2172
  %v2293 = vpack.c.b16 %v2193, %v2173
  %v2294 = vpack.c.b16 %v2194, %v2174
  %v2295 = vpack.c.b16 %v2195, %v2175
  %v2296 = vpack.c.b16 %v2196, %v2176
  %v2297 = vpack.c.b16 %v2197, %v2177
  %v2298 = vpack.c.b16 %v2198, %v2178
  %v2299 = vpack.c.b16 %v2199, %v2179
  %v2300 = vpack.c.b16 %v2220, %v2200
  %v2301 = vpack.c.b16 %v2221, %v2201
  %v2302 = vpack.c.b16 %v2222, %v2202
  %v2303 = vpack.c.b16 %v2223, %v2203
  %v2304 = vpack.c.b16 %v2224, %v2204
  %v2305 = vpack.c.b16 %v2225, %v2205
  %v2306 = vpack.c.b16 %v2226, %v2206
  %v2307 = vpack.c.b16 %v2227, %v2207
  %v2308 = vpack.c.b16 %v2228, %v2208
  %v2309 = vpack.c.b16 %v2229, %v2209
  %v2310 = vpack.c.b16 %v2230, %v2210
  %v2311 = vpack.c.b16 %v2231, %v2211
  %v2312 = vpack.c.b16 %v2232, %v2212
  %v2313 = vpack.c.b16 %v2233, %v2213
  %v2314 = vpack.c.b16 %v2234, %v2214
  %v2315 = vpack.c.b16 %v2235, %v2215
  %v2316 = vpack.c.b16 %v2236, %v2216
  %v2317 = vpack.c.b16 %v2237, %v2217
  %v2318 = vpack.c.b16 %v2238, %v2218
  %v2319 = vpack.c.b16 %v2239, %v2219
  %v2403 = vlaneseq
  %v2404 = vshrl.u32 %v2403, 7
  %v2405 = vsub.s32 0, %v2404
  %v2406 = vrot.slane %v1997, %v2405
  %v2407 = vlaneseq
  %v2408 = vshrl.u32 %v2407, 7
  %v2409 = vsub.s32 1, %v2408
  %v2410 = vrot.slane %v1997, %v2409
  %v2411 = vlaneseq
  %v2412 = vshrl.u32 %v2411, 7
  %v2413 = vsub.s32 2, %v2412
  %v2414 = vrot.slane %v1997, %v2413
  %v2415 = vlaneseq
  %v2416 = vshrl.u32 %v2415, 7
  %v2417 = vsub.s32 3, %v2416
  %v2418 = vrot.slane %v1997, %v2417
  %v2419 = vlaneseq
  %v2420 = vshrl.u32 %v2419, 7
  %v2421 = vsub.s32 4, %v2420
  %v2422 = vrot.slane %v1997, %v2421
  %v2423 = vlaneseq
  %v2424 = vshrl.u32 %v2423, 7
  %v2425 = vsub.s32 5, %v2424
  %v2426 = vrot.slane %v1997, %v2425
  %v2427 = vlaneseq
  %v2428 = vshrl.u32 %v2427, 7
  %v2429 = vsub.s32 6, %v2428
  %v2430 = vrot.slane %v1997, %v2429
  %v2431 = vlaneseq
  %v2432 = vshrl.u32 %v2431, 7
  %v2433 = vsub.s32 7, %v2432
  %v2434 = vrot.slane %v1997, %v2433
  %v2435 = vlaneseq
  %v2436 = vshrl.u32 %v2435, 7
  %v2437 = vsub.s32 0, %v2436
  %v2438 = vrot.slane %v1998, %v2437
  %v2439 = vlaneseq
  %v2440 = vshrl.u32 %v2439, 7
  %v2441 = vsub.s32 1, %v2440
  %v2442 = vrot.slane %v1998, %v2441
  %v2443 = vlaneseq
  %v2444 = vshrl.u32 %v2443, 7
  %v2445 = vsub.s32 2, %v2444
  %v2446 = vrot.slane %v1998, %v2445
  %v2447 = vlaneseq
  %v2448 = vshrl.u32 %v2447, 7
  %v2449 = vsub.s32 3, %v2448
  %v2450 = vrot.slane %v1998, %v2449
  %v2451 = vlaneseq
  %v2452 = vshrl.u32 %v2451, 7
  %v2453 = vsub.s32 4, %v2452
  %v2454 = vrot.slane %v1998, %v2453
  %v2455 = vlaneseq
  %v2456 = vshrl.u32 %v2455, 7
  %v2457 = vsub.s32 5, %v2456
  %v2458 = vrot.slane %v1998, %v2457
  %v2459 = vlaneseq
  %v2460 = vshrl.u32 %v2459, 7
  %v2461 = vsub.s32 6, %v2460
  %v2462 = vrot.slane %v1998, %v2461
  %v2463 = vlaneseq
  %v2464 = vshrl.u32 %v2463, 7
  %v2465 = vsub.s32 7, %v2464
  %v2466 = vrot.slane %v1998, %v2465
  %v2467 = vlaneseq
  %v2468 = vshrl.u32 %v2467, 7
  %v2469 = vsub.s32 0, %v2468
  %v2470 = vrot.slane %v1999, %v2469
  %v2471 = vlaneseq
  %v2472 = vshrl.u32 %v2471, 7
  %v2473 = vsub.s32 1, %v2472
  %v2474 = vrot.slane %v1999, %v2473
  %v2475 = vlaneseq
  %v2476 = vshrl.u32 %v2475, 7
  %v2477 = vsub.s32 2, %v2476
  %v2478 = vrot.slane %v1999, %v2477
  %v2479 = vlaneseq
  %v2480 = vshrl.u32 %v2479, 7
  %v2481 = vsub.s32 3, %v2480
  %v2482 = vrot.slane %v1999, %v2481
  %vm2503 = vcmask 523264
  %v2505 = vsel %vm2503, %v1916, 0
  %2507 = vmatprep.subr.bf16.mxu0 %v2241
  %2508 = vmatpush1.bf16.msra.mxu0 %v2240
  %2509 = vmatprep.subr.bf16.mxu0 %v2261
  %2510 = vmatpush1.bf16.msra.mxu0 %v2260
  %2511 = vmatprep.subr.bf16.mxu0 %v2281
  %2512 = vmatpush1.bf16.msra.mxu0 %v2280
  %2513 = vmatprep.subr.bf16.mxu0 %v2301
  %2514 = vmatpush1.bf16.msra.mxu0 %v2300
  %2515 = vmatprep.subr.bf16.mxu0 0
  %2516 = vmatpush1.bf16.msra.mxu0 0
  %2517 = vmatprep.subr.bf16.mxu0 0
  %2518 = vmatpush1.bf16.msra.mxu0 0
  %2519 = vmatprep.subr.bf16.mxu0 0
  %2520 = vmatpush1.bf16.msra.mxu0 0
  %2521 = vmatprep.subr.bf16.mxu0 0
  %2522 = vmatpush1.bf16.msra.mxu0 0
  %2523 = vmatprep.subr.bf16.mxu0 0
  %2524 = vmatpush1.bf16.msra.mxu0 0
  %2525 = vmatprep.subr.bf16.mxu0 0
  %2526 = vmatpush1.bf16.msra.mxu0 0
  %2527 = vmatprep.subr.bf16.mxu0 0
  %2528 = vmatpush1.bf16.msra.mxu0 0
  %2529 = vmatprep.subr.bf16.mxu0 0
  %2530 = vmatpush1.bf16.msra.mxu0 0
  %2531 = vmatprep.subr.bf16.mxu0 0
  %2532 = vmatpush1.bf16.msra.mxu0 0
  %2533 = vmatprep.subr.bf16.mxu0 0
  %2534 = vmatpush1.bf16.msra.mxu0 0
  %2535 = vmatprep.subr.bf16.mxu0 0
  %2536 = vmatpush1.bf16.msra.mxu0 0
  %2537 = vmatprep.subr.bf16.mxu0 0
  %2538 = vmatpush1.bf16.msra.mxu0 0
  %2539 = vmatprep.mubr.bf16.mxu0 0
  %2540 = vmatmul.mubr.bf16.gmra.mrb[0].mxu0 %v2505
  %v2541 = vpop.f32.mrb[0].mxu0
  %v2542 = vadd.f32 %v2406, %v2541
  %v2543 = vpop.f32.mrb[0].mxu0
  %v2544 = vadd.f32 %v2410, %v2543
  %v2545 = vpop.f32.mrb[0].mxu0
  %v2546 = vpop.f32.mrb[0].mxu0
  %2547 = vdwg.mxu0
  %2548 = vmatprep.subr.bf16.mxu0 %v2243
  %2549 = vmatpush1.bf16.msra.mxu0 %v2242
  %2550 = vmatprep.subr.bf16.mxu0 %v2263
  %2551 = vmatpush1.bf16.msra.mxu0 %v2262
  %2552 = vmatprep.subr.bf16.mxu0 %v2283
  %2553 = vmatpush1.bf16.msra.mxu0 %v2282
  %2554 = vmatprep.subr.bf16.mxu0 %v2303
  %2555 = vmatpush1.bf16.msra.mxu0 %v2302
  %2556 = vmatprep.subr.bf16.mxu0 0
  %2557 = vmatpush1.bf16.msra.mxu0 0
  %2558 = vmatprep.subr.bf16.mxu0 0
  %2559 = vmatpush1.bf16.msra.mxu0 0
  %2560 = vmatprep.subr.bf16.mxu0 0
  %2561 = vmatpush1.bf16.msra.mxu0 0
  %2562 = vmatprep.subr.bf16.mxu0 0
  %2563 = vmatpush1.bf16.msra.mxu0 0
  %2564 = vmatprep.subr.bf16.mxu0 0
  %2565 = vmatpush1.bf16.msra.mxu0 0
  %2566 = vmatprep.subr.bf16.mxu0 0
  %2567 = vmatpush1.bf16.msra.mxu0 0
  %2568 = vmatprep.subr.bf16.mxu0 0
  %2569 = vmatpush1.bf16.msra.mxu0 0
  %2570 = vmatprep.subr.bf16.mxu0 0
  %2571 = vmatpush1.bf16.msra.mxu0 0
  %2572 = vmatprep.subr.bf16.mxu0 0
  %2573 = vmatpush1.bf16.msra.mxu0 0
  %2574 = vmatprep.subr.bf16.mxu0 0
  %2575 = vmatpush1.bf16.msra.mxu0 0
  %2576 = vmatprep.subr.bf16.mxu0 0
  %2577 = vmatpush1.bf16.msra.mxu0 0
  %2578 = vmatprep.subr.bf16.mxu0 0
  %2579 = vmatpush1.bf16.msra.mxu0 0
  %2580 = vmatprep.mubr.bf16.mxu0 0
  %2581 = vmatmul.mubr.bf16.gmra.mrb[0].mxu0 %v2505
  %v2582 = vpop.f32.mrb[0].mxu0
  %v2583 = vadd.f32 %v2414, %v2582
  %v2584 = vpop.f32.mrb[0].mxu0
  %v2585 = vadd.f32 %v2418, %v2584
  %v2586 = vpop.f32.mrb[0].mxu0
  %v2587 = vpop.f32.mrb[0].mxu0
  %2588 = vdwg.mxu0
  %2589 = vmatprep.subr.bf16.mxu0 %v2245
  %2590 = vmatpush1.bf16.msra.mxu0 %v2244
  %2591 = vmatprep.subr.bf16.mxu0 %v2265
  %2592 = vmatpush1.bf16.msra.mxu0 %v2264
  %2593 = vmatprep.subr.bf16.mxu0 %v2285
  %2594 = vmatpush1.bf16.msra.mxu0 %v2284
  %2595 = vmatprep.subr.bf16.mxu0 %v2305
  %2596 = vmatpush1.bf16.msra.mxu0 %v2304
  %2597 = vmatprep.subr.bf16.mxu0 0
  %2598 = vmatpush1.bf16.msra.mxu0 0
  %2599 = vmatprep.subr.bf16.mxu0 0
  %2600 = vmatpush1.bf16.msra.mxu0 0
  %2601 = vmatprep.subr.bf16.mxu0 0
  %2602 = vmatpush1.bf16.msra.mxu0 0
  %2603 = vmatprep.subr.bf16.mxu0 0
  %2604 = vmatpush1.bf16.msra.mxu0 0
  %2605 = vmatprep.subr.bf16.mxu0 0
  %2606 = vmatpush1.bf16.msra.mxu0 0
  %2607 = vmatprep.subr.bf16.mxu0 0
  %2608 = vmatpush1.bf16.msra.mxu0 0
  %2609 = vmatprep.subr.bf16.mxu0 0
  %2610 = vmatpush1.bf16.msra.mxu0 0
  %2611 = vmatprep.subr.bf16.mxu0 0
  %2612 = vmatpush1.bf16.msra.mxu0 0
  %2613 = vmatprep.subr.bf16.mxu0 0
  %2614 = vmatpush1.bf16.msra.mxu0 0
  %2615 = vmatprep.subr.bf16.mxu0 0
  %2616 = vmatpush1.bf16.msra.mxu0 0
  %2617 = vmatprep.subr.bf16.mxu0 0
  %2618 = vmatpush1.bf16.msra.mxu0 0
  %2619 = vmatprep.subr.bf16.mxu0 0
  %2620 = vmatpush1.bf16.msra.mxu0 0
  %2621 = vmatprep.mubr.bf16.mxu0 0
  %2622 = vmatmul.mubr.bf16.gmra.mrb[0].mxu0 %v2505
  %v2623 = vpop.f32.mrb[0].mxu0
  %v2624 = vadd.f32 %v2422, %v2623
  %v2625 = vpop.f32.mrb[0].mxu0
  %v2626 = vadd.f32 %v2426, %v2625
  %v2627 = vpop.f32.mrb[0].mxu0
  %v2628 = vpop.f32.mrb[0].mxu0
  %2629 = vdwg.mxu0
  %2630 = vmatprep.subr.bf16.mxu0 %v2247
  %2631 = vmatpush1.bf16.msra.mxu0 %v2246
  %2632 = vmatprep.subr.bf16.mxu0 %v2267
  %2633 = vmatpush1.bf16.msra.mxu0 %v2266
  %2634 = vmatprep.subr.bf16.mxu0 %v2287
  %2635 = vmatpush1.bf16.msra.mxu0 %v2286
  %2636 = vmatprep.subr.bf16.mxu0 %v2307
  %2637 = vmatpush1.bf16.msra.mxu0 %v2306
  %2638 = vmatprep.subr.bf16.mxu0 0
  %2639 = vmatpush1.bf16.msra.mxu0 0
  %2640 = vmatprep.subr.bf16.mxu0 0
  %2641 = vmatpush1.bf16.msra.mxu0 0
  %2642 = vmatprep.subr.bf16.mxu0 0
  %2643 = vmatpush1.bf16.msra.mxu0 0
  %2644 = vmatprep.subr.bf16.mxu0 0
  %2645 = vmatpush1.bf16.msra.mxu0 0
  %2646 = vmatprep.subr.bf16.mxu0 0
  %2647 = vmatpush1.bf16.msra.mxu0 0
  %2648 = vmatprep.subr.bf16.mxu0 0
  %2649 = vmatpush1.bf16.msra.mxu0 0
  %2650 = vmatprep.subr.bf16.mxu0 0
  %2651 = vmatpush1.bf16.msra.mxu0 0
  %2652 = vmatprep.subr.bf16.mxu0 0
  %2653 = vmatpush1.bf16.msra.mxu0 0
  %2654 = vmatprep.subr.bf16.mxu0 0
  %2655 = vmatpush1.bf16.msra.mxu0 0
  %2656 = vmatprep.subr.bf16.mxu0 0
  %2657 = vmatpush1.bf16.msra.mxu0 0
  %2658 = vmatprep.subr.bf16.mxu0 0
  %2659 = vmatpush1.bf16.msra.mxu0 0
  %2660 = vmatprep.subr.bf16.mxu0 0
  %2661 = vmatpush1.bf16.msra.mxu0 0
  %2662 = vmatprep.mubr.bf16.mxu0 0
  %2663 = vmatmul.mubr.bf16.gmra.mrb[0].mxu0 %v2505
  %v2664 = vpop.f32.mrb[0].mxu0
  %v2665 = vadd.f32 %v2430, %v2664
  %v2666 = vpop.f32.mrb[0].mxu0
  %v2667 = vadd.f32 %v2434, %v2666
  %v2668 = vpop.f32.mrb[0].mxu0
  %v2669 = vpop.f32.mrb[0].mxu0
  %2670 = vdwg.mxu0
  %2671 = vmatprep.subr.bf16.mxu0 %v2249
  %2672 = vmatpush1.bf16.msra.mxu0 %v2248
  %2673 = vmatprep.subr.bf16.mxu0 %v2269
  %2674 = vmatpush1.bf16.msra.mxu0 %v2268
  %2675 = vmatprep.subr.bf16.mxu0 %v2289
  %2676 = vmatpush1.bf16.msra.mxu0 %v2288
  %2677 = vmatprep.subr.bf16.mxu0 %v2309
  %2678 = vmatpush1.bf16.msra.mxu0 %v2308
  %2679 = vmatprep.subr.bf16.mxu0 0
  %2680 = vmatpush1.bf16.msra.mxu0 0
  %2681 = vmatprep.subr.bf16.mxu0 0
  %2682 = vmatpush1.bf16.msra.mxu0 0
  %2683 = vmatprep.subr.bf16.mxu0 0
  %2684 = vmatpush1.bf16.msra.mxu0 0
  %2685 = vmatprep.subr.bf16.mxu0 0
  %2686 = vmatpush1.bf16.msra.mxu0 0
  %2687 = vmatprep.subr.bf16.mxu0 0
  %2688 = vmatpush1.bf16.msra.mxu0 0
  %2689 = vmatprep.subr.bf16.mxu0 0
  %2690 = vmatpush1.bf16.msra.mxu0 0
  %2691 = vmatprep.subr.bf16.mxu0 0
  %2692 = vmatpush1.bf16.msra.mxu0 0
  %2693 = vmatprep.subr.bf16.mxu0 0
  %2694 = vmatpush1.bf16.msra.mxu0 0
  %2695 = vmatprep.subr.bf16.mxu0 0
  %2696 = vmatpush1.bf16.msra.mxu0 0
  %2697 = vmatprep.subr.bf16.mxu0 0
  %2698 = vmatpush1.bf16.msra.mxu0 0
  %2699 = vmatprep.subr.bf16.mxu0 0
  %2700 = vmatpush1.bf16.msra.mxu0 0
  %2701 = vmatprep.subr.bf16.mxu0 0
  %2702 = vmatpush1.bf16.msra.mxu0 0
  %2703 = vmatprep.mubr.bf16.mxu0 0
  %2704 = vmatmul.mubr.bf16.gmra.mrb[0].mxu0 %v2505
  %v2705 = vpop.f32.mrb[0].mxu0
  %v2706 = vadd.f32 %v2438, %v2705
  %v2707 = vpop.f32.mrb[0].mxu0
  %v2708 = vadd.f32 %v2442, %v2707
  %v2709 = vpop.f32.mrb[0].mxu0
  %v2710 = vpop.f32.mrb[0].mxu0
  %2711 = vdwg.mxu0
  %2712 = vmatprep.subr.bf16.mxu0 %v2251
  %2713 = vmatpush1.bf16.msra.mxu0 %v2250
  %2714 = vmatprep.subr.bf16.mxu0 %v2271
  %2715 = vmatpush1.bf16.msra.mxu0 %v2270
  %2716 = vmatprep.subr.bf16.mxu0 %v2291
  %2717 = vmatpush1.bf16.msra.mxu0 %v2290
  %2718 = vmatprep.subr.bf16.mxu0 %v2311
  %2719 = vmatpush1.bf16.msra.mxu0 %v2310
  %2720 = vmatprep.subr.bf16.mxu0 0
  %2721 = vmatpush1.bf16.msra.mxu0 0
  %2722 = vmatprep.subr.bf16.mxu0 0
  %2723 = vmatpush1.bf16.msra.mxu0 0
  %2724 = vmatprep.subr.bf16.mxu0 0
  %2725 = vmatpush1.bf16.msra.mxu0 0
  %2726 = vmatprep.subr.bf16.mxu0 0
  %2727 = vmatpush1.bf16.msra.mxu0 0
  %2728 = vmatprep.subr.bf16.mxu0 0
  %2729 = vmatpush1.bf16.msra.mxu0 0
  %2730 = vmatprep.subr.bf16.mxu0 0
  %2731 = vmatpush1.bf16.msra.mxu0 0
  %2732 = vmatprep.subr.bf16.mxu0 0
  %2733 = vmatpush1.bf16.msra.mxu0 0
  %2734 = vmatprep.subr.bf16.mxu0 0
  %2735 = vmatpush1.bf16.msra.mxu0 0
  %2736 = vmatprep.subr.bf16.mxu0 0
  %2737 = vmatpush1.bf16.msra.mxu0 0
  %2738 = vmatprep.subr.bf16.mxu0 0
  %2739 = vmatpush1.bf16.msra.mxu0 0
  %2740 = vmatprep.subr.bf16.mxu0 0
  %2741 = vmatpush1.bf16.msra.mxu0 0
  %2742 = vmatprep.subr.bf16.mxu0 0
  %2743 = vmatpush1.bf16.msra.mxu0 0
  %2744 = vmatprep.mubr.bf16.mxu0 0
  %2745 = vmatmul.mubr.bf16.gmra.mrb[0].mxu0 %v2505
  %v2746 = vpop.f32.mrb[0].mxu0
  %v2747 = vadd.f32 %v2446, %v2746
  %v2748 = vpop.f32.mrb[0].mxu0
  %v2749 = vadd.f32 %v2450, %v2748
  %v2750 = vpop.f32.mrb[0].mxu0
  %v2751 = vpop.f32.mrb[0].mxu0
  %2752 = vdwg.mxu0
  %2753 = vmatprep.subr.bf16.mxu0 %v2253
  %2754 = vmatpush1.bf16.msra.mxu0 %v2252
  %2755 = vmatprep.subr.bf16.mxu0 %v2273
  %2756 = vmatpush1.bf16.msra.mxu0 %v2272
  %2757 = vmatprep.subr.bf16.mxu0 %v2293
  %2758 = vmatpush1.bf16.msra.mxu0 %v2292
  %2759 = vmatprep.subr.bf16.mxu0 %v2313
  %2760 = vmatpush1.bf16.msra.mxu0 %v2312
  %2761 = vmatprep.subr.bf16.mxu0 0
  %2762 = vmatpush1.bf16.msra.mxu0 0
  %2763 = vmatprep.subr.bf16.mxu0 0
  %2764 = vmatpush1.bf16.msra.mxu0 0
  %2765 = vmatprep.subr.bf16.mxu0 0
  %2766 = vmatpush1.bf16.msra.mxu0 0
  %2767 = vmatprep.subr.bf16.mxu0 0
  %2768 = vmatpush1.bf16.msra.mxu0 0
  %2769 = vmatprep.subr.bf16.mxu0 0
  %2770 = vmatpush1.bf16.msra.mxu0 0
  %2771 = vmatprep.subr.bf16.mxu0 0
  %2772 = vmatpush1.bf16.msra.mxu0 0
  %2773 = vmatprep.subr.bf16.mxu0 0
  %2774 = vmatpush1.bf16.msra.mxu0 0
  %2775 = vmatprep.subr.bf16.mxu0 0
  %2776 = vmatpush1.bf16.msra.mxu0 0
  %2777 = vmatprep.subr.bf16.mxu0 0
  %2778 = vmatpush1.bf16.msra.mxu0 0
  %2779 = vmatprep.subr.bf16.mxu0 0
  %2780 = vmatpush1.bf16.msra.mxu0 0
  %2781 = vmatprep.subr.bf16.mxu0 0
  %2782 = vmatpush1.bf16.msra.mxu0 0
  %2783 = vmatprep.subr.bf16.mxu0 0
  %2784 = vmatpush1.bf16.msra.mxu0 0
  %2785 = vmatprep.mubr.bf16.mxu0 0
  %2786 = vmatmul.mubr.bf16.gmra.mrb[0].mxu0 %v2505
  %v2787 = vpop.f32.mrb[0].mxu0
  %v2788 = vadd.f32 %v2454, %v2787
  %v2789 = vpop.f32.mrb[0].mxu0
  %v2790 = vadd.f32 %v2458, %v2789
  %v2791 = vpop.f32.mrb[0].mxu0
  %v2792 = vpop.f32.mrb[0].mxu0
  %2793 = vdwg.mxu0
  %2794 = vmatprep.subr.bf16.mxu0 %v2255
  %2795 = vmatpush1.bf16.msra.mxu0 %v2254
  %2796 = vmatprep.subr.bf16.mxu0 %v2275
  %2797 = vmatpush1.bf16.msra.mxu0 %v2274
  %2798 = vmatprep.subr.bf16.mxu0 %v2295
  %2799 = vmatpush1.bf16.msra.mxu0 %v2294
  %2800 = vmatprep.subr.bf16.mxu0 %v2315
  %2801 = vmatpush1.bf16.msra.mxu0 %v2314
  %2802 = vmatprep.subr.bf16.mxu0 0
  %2803 = vmatpush1.bf16.msra.mxu0 0
  %2804 = vmatprep.subr.bf16.mxu0 0
  %2805 = vmatpush1.bf16.msra.mxu0 0
  %2806 = vmatprep.subr.bf16.mxu0 0
  %2807 = vmatpush1.bf16.msra.mxu0 0
  %2808 = vmatprep.subr.bf16.mxu0 0
  %2809 = vmatpush1.bf16.msra.mxu0 0
  %2810 = vmatprep.subr.bf16.mxu0 0
  %2811 = vmatpush1.bf16.msra.mxu0 0
  %2812 = vmatprep.subr.bf16.mxu0 0
  %2813 = vmatpush1.bf16.msra.mxu0 0
  %2814 = vmatprep.subr.bf16.mxu0 0
  %2815 = vmatpush1.bf16.msra.mxu0 0
  %2816 = vmatprep.subr.bf16.mxu0 0
  %2817 = vmatpush1.bf16.msra.mxu0 0
  %2818 = vmatprep.subr.bf16.mxu0 0
  %2819 = vmatpush1.bf16.msra.mxu0 0
  %2820 = vmatprep.subr.bf16.mxu0 0
  %2821 = vmatpush1.bf16.msra.mxu0 0
  %2822 = vmatprep.subr.bf16.mxu0 0
  %2823 = vmatpush1.bf16.msra.mxu0 0
  %2824 = vmatprep.subr.bf16.mxu0 0
  %2825 = vmatpush1.bf16.msra.mxu0 0
  %2826 = vmatprep.mubr.bf16.mxu0 0
  %2827 = vmatmul.mubr.bf16.gmra.mrb[0].mxu0 %v2505
  %v2828 = vpop.f32.mrb[0].mxu0
  %v2829 = vadd.f32 %v2462, %v2828
  %v2830 = vpop.f32.mrb[0].mxu0
  %v2831 = vadd.f32 %v2466, %v2830
  %v2832 = vpop.f32.mrb[0].mxu0
  %v2833 = vpop.f32.mrb[0].mxu0
  %2834 = vdwg.mxu0
  %2835 = vmatprep.subr.bf16.mxu0 %v2257
  %2836 = vmatpush1.bf16.msra.mxu0 %v2256
  %2837 = vmatprep.subr.bf16.mxu0 %v2277
  %2838 = vmatpush1.bf16.msra.mxu0 %v2276
  %2839 = vmatprep.subr.bf16.mxu0 %v2297
  %2840 = vmatpush1.bf16.msra.mxu0 %v2296
  %2841 = vmatprep.subr.bf16.mxu0 %v2317
  %2842 = vmatpush1.bf16.msra.mxu0 %v2316
  %2843 = vmatprep.subr.bf16.mxu0 0
  %2844 = vmatpush1.bf16.msra.mxu0 0
  %2845 = vmatprep.subr.bf16.mxu0 0
  %2846 = vmatpush1.bf16.msra.mxu0 0
  %2847 = vmatprep.subr.bf16.mxu0 0
  %2848 = vmatpush1.bf16.msra.mxu0 0
  %2849 = vmatprep.subr.bf16.mxu0 0
  %2850 = vmatpush1.bf16.msra.mxu0 0
  %2851 = vmatprep.subr.bf16.mxu0 0
  %2852 = vmatpush1.bf16.msra.mxu0 0
  %2853 = vmatprep.subr.bf16.mxu0 0
  %2854 = vmatpush1.bf16.msra.mxu0 0
  %2855 = vmatprep.subr.bf16.mxu0 0
  %2856 = vmatpush1.bf16.msra.mxu0 0
  %2857 = vmatprep.subr.bf16.mxu0 0
  %2858 = vmatpush1.bf16.msra.mxu0 0
  %2859 = vmatprep.subr.bf16.mxu0 0
  %2860 = vmatpush1.bf16.msra.mxu0 0
  %2861 = vmatprep.subr.bf16.mxu0 0
  %2862 = vmatpush1.bf16.msra.mxu0 0
  %2863 = vmatprep.subr.bf16.mxu0 0
  %2864 = vmatpush1.bf16.msra.mxu0 0
  %2865 = vmatprep.subr.bf16.mxu0 0
  %2866 = vmatpush1.bf16.msra.mxu0 0
  %2867 = vmatprep.mubr.bf16.mxu0 0
  %2868 = vmatmul.mubr.bf16.gmra.mrb[0].mxu0 %v2505
  %v2869 = vpop.f32.mrb[0].mxu0
  %v2870 = vadd.f32 %v2470, %v2869
  %v2871 = vpop.f32.mrb[0].mxu0
  %v2872 = vadd.f32 %v2474, %v2871
  %v2873 = vpop.f32.mrb[0].mxu0
  %v2874 = vpop.f32.mrb[0].mxu0
  %2875 = vdwg.mxu0
  %2876 = vmatprep.subr.bf16.mxu0 %v2259
  %2877 = vmatpush1.bf16.msra.mxu0 %v2258
  %2878 = vmatprep.subr.bf16.mxu0 %v2279
  %2879 = vmatpush1.bf16.msra.mxu0 %v2278
  %2880 = vmatprep.subr.bf16.mxu0 %v2299
  %2881 = vmatpush1.bf16.msra.mxu0 %v2298
  %2882 = vmatprep.subr.bf16.mxu0 %v2319
  %2883 = vmatpush1.bf16.msra.mxu0 %v2318
  %2884 = vmatprep.subr.bf16.mxu0 0
  %2885 = vmatpush1.bf16.msra.mxu0 0
  %2886 = vmatprep.subr.bf16.mxu0 0
  %2887 = vmatpush1.bf16.msra.mxu0 0
  %2888 = vmatprep.subr.bf16.mxu0 0
  %2889 = vmatpush1.bf16.msra.mxu0 0
  %2890 = vmatprep.subr.bf16.mxu0 0
  %2891 = vmatpush1.bf16.msra.mxu0 0
  %2892 = vmatprep.subr.bf16.mxu0 0
  %2893 = vmatpush1.bf16.msra.mxu0 0
  %2894 = vmatprep.subr.bf16.mxu0 0
  %2895 = vmatpush1.bf16.msra.mxu0 0
  %2896 = vmatprep.subr.bf16.mxu0 0
  %2897 = vmatpush1.bf16.msra.mxu0 0
  %2898 = vmatprep.subr.bf16.mxu0 0
  %2899 = vmatpush1.bf16.msra.mxu0 0
  %2900 = vmatprep.subr.bf16.mxu0 0
  %2901 = vmatpush1.bf16.msra.mxu0 0
  %2902 = vmatprep.subr.bf16.mxu0 0
  %2903 = vmatpush1.bf16.msra.mxu0 0
  %2904 = vmatprep.subr.bf16.mxu0 0
  %2905 = vmatpush1.bf16.msra.mxu0 0
  %2906 = vmatprep.subr.bf16.mxu0 0
  %2907 = vmatpush1.bf16.msra.mxu0 0
  %2908 = vmatprep.mubr.bf16.mxu0 0
  %2909 = vmatmul.mubr.bf16.gmra.mrb[0].mxu0 %v2505
  %v2910 = vpop.f32.mrb[0].mxu0
  %v2911 = vadd.f32 %v2478, %v2910
  %v2912 = vpop.f32.mrb[0].mxu0
  %v2913 = vadd.f32 %v2482, %v2912
  %v2914 = vpop.f32.mrb[0].mxu0
  %v2915 = vpop.f32.mrb[0].mxu0
  %2916 = vdwg.mxu0
  %v2917 = vtanh.pop %v2542
  %v2918 = vtanh.pop %v2544
  %v2919 = vtanh.pop %v2583
  %v2920 = vtanh.pop %v2585
  %v2921 = vtanh.pop %v2624
  %v2922 = vtanh.pop %v2626
  %v2923 = vtanh.pop %v2665
  %v2924 = vtanh.pop %v2667
  %v2925 = vtanh.pop %v2706
  %v2926 = vtanh.pop %v2708
  %v2927 = vtanh.pop %v2747
  %v2928 = vtanh.pop %v2749
  %v2929 = vtanh.pop %v2788
  %v2930 = vtanh.pop %v2790
  %v2931 = vtanh.pop %v2829
  %v2932 = vtanh.pop %v2831
  %v2933 = vtanh.pop %v2870
  %v2934 = vtanh.pop %v2872
  %v2935 = vtanh.pop %v2911
  %v2936 = vtanh.pop %v2913
  %v2937 = vmul.f32 %v2917, 4.0
  %v2938 = vmul.f32 %v2918, 4.0
  %v2939 = vmul.f32 %v2919, 4.0
  %v2940 = vmul.f32 %v2920, 4.0
  %v2941 = vmul.f32 %v2921, 4.0
  %v2942 = vmul.f32 %v2922, 4.0
  %v2943 = vmul.f32 %v2923, 4.0
  %v2944 = vmul.f32 %v2924, 4.0
  %v2945 = vmul.f32 %v2925, 4.0
  %v2946 = vmul.f32 %v2926, 4.0
  %v2947 = vmul.f32 %v2927, 4.0
  %v2948 = vmul.f32 %v2928, 4.0
  %v2949 = vmul.f32 %v2929, 4.0
  %v2950 = vmul.f32 %v2930, 4.0
  %v2951 = vmul.f32 %v2931, 4.0
  %v2952 = vmul.f32 %v2932, 4.0
  %v2953 = vmul.f32 %v2933, 4.0
  %v2954 = vmul.f32 %v2934, 4.0
  %v2955 = vmul.f32 %v2935, 4.0
  %v2956 = vmul.f32 %v2936, 4.0
  %v2977 = vcombine.low %v2937, %v2938
  %v2978 = vcombine.low %v2939, %v2940
  %v2979 = vcombine.low %v2941, %v2942
  %v2980 = vcombine.low %v2943, %v2944
  %v2982 = vunpack.c.l.s4 1966171168
  %v2983 = vunpack.c.0.s8 %v2982
  %v2984 = vlaneseq
  %v2985 = vshrl.u32 %v2984, 7
  %v2986 = vsub.s32 %v2983, %v2985
  %v2987 = vrot.slane %v2977, %v2986
  %v2989 = vunpack.c.l.s4 1966171168
  %v2990 = vunpack.c.0.s8 %v2989
  %v2991 = vlaneseq
  %v2992 = vshrl.u32 %v2991, 7
  %v2993 = vsub.s32 %v2990, %v2992
  %v2994 = vrot.slane %v2978, %v2993
  %v2996 = vunpack.c.l.s4 1966171168
  %v2997 = vunpack.c.0.s8 %v2996
  %v2998 = vlaneseq
  %v2999 = vshrl.u32 %v2998, 7
  %v3000 = vsub.s32 %v2997, %v2999
  %v3001 = vrot.slane %v2979, %v3000
  %v3003 = vunpack.c.l.s4 1966171168
  %v3004 = vunpack.c.0.s8 %v3003
  %v3005 = vlaneseq
  %v3006 = vshrl.u32 %v3005, 7
  %v3007 = vsub.s32 %v3004, %v3006
  %v3008 = vrot.slane %v2980, %v3007
  %v3009 = vcombine.low %v2987, %v2994
  %v3010 = vcombine.low %v3001, %v3008
  %v3012 = vunpack.c.l.s4 1966171168
  %v3013 = vunpack.c.0.s8 %v3012
  %v3014 = vlaneseq
  %v3015 = vshrl.u32 %v3014, 7
  %v3016 = vsub.s32 %v3013, %v3015
  %v3017 = vrot.slane %v3009, %v3016
  %v3019 = vunpack.c.l.s4 1966171168
  %v3020 = vunpack.c.0.s8 %v3019
  %v3021 = vlaneseq
  %v3022 = vshrl.u32 %v3021, 7
  %v3023 = vsub.s32 %v3020, %v3022
  %v3024 = vrot.slane %v3010, %v3023
  %v3025 = vcombine.low %v3017, %v3024
  %v3026 = vcombine.low %v2945, %v2946
  %v3027 = vcombine.low %v2947, %v2948
  %v3028 = vcombine.low %v2949, %v2950
  %v3029 = vcombine.low %v2951, %v2952
  %v3031 = vunpack.c.l.s4 1966171168
  %v3032 = vunpack.c.0.s8 %v3031
  %v3033 = vlaneseq
  %v3034 = vshrl.u32 %v3033, 7
  %v3035 = vsub.s32 %v3032, %v3034
  %v3036 = vrot.slane %v3026, %v3035
  %v3038 = vunpack.c.l.s4 1966171168
  %v3039 = vunpack.c.0.s8 %v3038
  %v3040 = vlaneseq
  %v3041 = vshrl.u32 %v3040, 7
  %v3042 = vsub.s32 %v3039, %v3041
  %v3043 = vrot.slane %v3027, %v3042
  %v3045 = vunpack.c.l.s4 1966171168
  %v3046 = vunpack.c.0.s8 %v3045
  %v3047 = vlaneseq
  %v3048 = vshrl.u32 %v3047, 7
  %v3049 = vsub.s32 %v3046, %v3048
  %v3050 = vrot.slane %v3028, %v3049
  %v3052 = vunpack.c.l.s4 1966171168
  %v3053 = vunpack.c.0.s8 %v3052
  %v3054 = vlaneseq
  %v3055 = vshrl.u32 %v3054, 7
  %v3056 = vsub.s32 %v3053, %v3055
  %v3057 = vrot.slane %v3029, %v3056
  %v3058 = vcombine.low %v3036, %v3043
  %v3059 = vcombine.low %v3050, %v3057
  %v3061 = vunpack.c.l.s4 1966171168
  %v3062 = vunpack.c.0.s8 %v3061
  %v3063 = vlaneseq
  %v3064 = vshrl.u32 %v3063, 7
  %v3065 = vsub.s32 %v3062, %v3064
  %v3066 = vrot.slane %v3058, %v3065
  %v3068 = vunpack.c.l.s4 1966171168
  %v3069 = vunpack.c.0.s8 %v3068
  %v3070 = vlaneseq
  %v3071 = vshrl.u32 %v3070, 7
  %v3072 = vsub.s32 %v3069, %v3071
  %v3073 = vrot.slane %v3059, %v3072
  %v3074 = vcombine.low %v3066, %v3073
  %v3075 = vcombine.low %v2953, %v2954
  %v3076 = vcombine.low %v2955, %v2956
  %v3078 = vunpack.c.l.s4 1966171168
  %v3079 = vunpack.c.0.s8 %v3078
  %v3080 = vlaneseq
  %v3081 = vshrl.u32 %v3080, 7
  %v3082 = vsub.s32 %v3079, %v3081
  %v3083 = vrot.slane %v3075, %v3082
  %v3085 = vunpack.c.l.s4 1966171168
  %v3086 = vunpack.c.0.s8 %v3085
  %v3087 = vlaneseq
  %v3088 = vshrl.u32 %v3087, 7
  %v3089 = vsub.s32 %v3086, %v3088
  %v3090 = vrot.slane %v3076, %v3089
  %v3091 = vcombine.low %v3083, %v3090
  %v3093 = vunpack.c.l.s4 1966171168
  %v3094 = vunpack.c.0.s8 %v3093
  %v3095 = vlaneseq
  %v3096 = vshrl.u32 %v3095, 7
  %v3097 = vsub.s32 %v3094, %v3096
  %v3098 = vrot.slane %v3091, %v3097
  %v3102 = vadd.f32 %v27, %v3025
  %v3103 = vadd.f32 %v28, %v3074
  %v3104 = vadd.f32 %v29, %v3098
  %3105 = vst [vmem:[%s7] sm:$0xff] %v3102
  %3106 = vst [vmem:[%s7 + $0x8] sm:$0xff] %v3103
  %v3107 = vlaneseq
  %vm3108 = vcmp.ge.s32.totalorder %v3107, 0
  %vm3109 = vcmp.lt.s32.totalorder %v3107, 452
  %vm3110 = vmand %vm3108, %vm3109
  %3111 = vst.msk [vmem:[%s7 + $0x10] sm:$0xf] %vm3110, %v3104
  // Predicated region
  $region30: #{gen50_forward.1} parent=0 // pred_check
    _
  $region31: #{gen50_forward.1} parent=0 // pred_check_branch
    %3113 = sbr.rel (0) target = $region33
  $region32: #{gen50_forward.1} parent=0 // pred_region
    _
  $region33: #{gen50_forward.1} parent=0 // pred_fallthru
    _
  // Predicated region
  $region34: #{gen50_forward.1} parent=0 // pred_check
    _
  $region35: #{gen50_forward.1} parent=0 // pred_check_branch
    %3115 = sbr.rel (0) target = $region37
  $region36: #{gen50_forward.1} parent=0 // pred_region
    _
  $region37: #{gen50_forward.1} parent=0 // pred_fallthru
    _

</llo_original>
